<compile_context>
chip_gen: v5e
topology: v5e:2x2
jax: 0.10.0
libtpu: 0.0.40
codegen_flags: <defaults>
</compile_context>

<pallas_src>
import functools

import numpy as np
import jax
import jax.numpy as jnp
from jax.experimental import pallas as pl
from jax.experimental.pallas import tpu as pltpu

# ----------------------------------------------------------------------------
# Small deterministic config, consistent with CharAwareLM.__init__
# ----------------------------------------------------------------------------
SRC = dict(
    char_vocab=list(range(20)),      # len = 20
    word_vocab=list(range(30)),      # len = 30
    time_steps=8,
    embed_size_char=8,               # char_dim D
    embed_size_word=16,              # unused in forward
    hidden_size=32,                  # H
    num_filter_per_width=4,
    widths=[1, 2, 3],
    num_layer=2,
    batch_size=2,
    maxLen=10,
)
FILTER_LIST = [(SRC['num_filter_per_width'] * w, w) for w in SRC['widths']]
Y_K_SIZE = sum(c for c, _ in FILTER_LIST)        # 4 + 8 + 12 = 24


def _vmem_specs(n):
    return [pl.BlockSpec(memory_space=pltpu.MemorySpace.VMEM) for _ in range(n)]


# ----------------------------------------------------------------------------
# The single fused kernel
# ----------------------------------------------------------------------------
def _fused_kernel(idx_ref, emb_ref, wcnn_ref, bcnn_ref, mask_ref,
                  whw_ref, bhw_ref,
                  wih0_ref, whh0_ref, b0_ref, w1_ref, b1_ref,
                  wout_ref, bout_ref, h0_ref, c0_ref,
                  logits_ref, hT_ref, cT_ref,
                  *, B, T, L, D, Cv, K, H, w_max):
    N = B * T          # rows are time-major: row = t*B + b
    P = L              # conv window positions after zero-padding to L + w_max - 1

    # ---- char embedding lookup, fused in-kernel as one batched one-hot matmul --
    idx = idx_ref[...]                                        # (N, L) int32
    emb = emb_ref[...]                                        # (Cv, D)
    lane_iota = jax.lax.broadcasted_iota(jnp.int32, (N, Cv), 1)
    one_hot = jnp.concatenate(
        [(lane_iota == idx[:, l:l + 1]).astype(jnp.float32) for l in range(L)],
        axis=0)                                               # (L*N, Cv), row = l*N + n
    xe = jnp.dot(one_hot, emb, preferred_element_type=jnp.float32)  # (L*N, D)
    xs = [xe[l * N:(l + 1) * N, :] for l in range(L)]         # per char position
    xs += [jnp.zeros((N, D), jnp.float32)] * (w_max - 1)      # zero-padded positions

    # ---- merged char-CNN: one batched matmul over all windows & all widths -----
    wins = [jnp.concatenate(xs[p:p + w_max], axis=1) for p in range(P)]  # (N, w_max*D)
    x_win = jnp.concatenate(wins, axis=0)                     # (P*N, w_max*D)
    s = jnp.tanh(jnp.dot(x_win, wcnn_ref[...], preferred_element_type=jnp.float32)
                 + bcnn_ref[...])                             # (P*N, K), bias hoisted
    y_k = jnp.full((N, K), -1e30, jnp.float32)
    for p in range(P):                                        # running max-pool
        y_k = jnp.maximum(y_k, s[p * N:(p + 1) * N, :] + mask_ref[p:p + 1, :])

    # ---- highway: transform + carry branches in one fused matmul ---------------
    hw = jnp.dot(y_k, whw_ref[...], preferred_element_type=jnp.float32) + bhw_ref[...]
    tg = jax.nn.sigmoid(hw[:, :K])
    z = tg * jnp.maximum(hw[:, K:], 0.0) + (1.0 - tg) * y_k   # (N, K)

    # ---- 2-layer LSTM -----------------------------------------------------------
    # layer-0 input projection hoisted out of the recurrence (one batched matmul)
    gi0 = (jnp.dot(z, wih0_ref[...], preferred_element_type=jnp.float32)
           + b0_ref[...])                                     # (N, 4H), row = t*B + b
    whh0 = whh0_ref[...]
    w1 = w1_ref[...]
    b1 = jnp.broadcast_to(b1_ref[...], (B, 4 * H))            # bias broadcast hoisted
    h_l0 = h0_ref[0]
    h_l1 = h0_ref[1]
    c_l0 = c0_ref[0]
    c_l1 = c0_ref[1]

    def split_gates(g):                                       # full-slab activations
        sg = jax.nn.sigmoid(g)                                # one EUP pass on (B, 4H)
        th = jnp.tanh(g)                                      # one EUP pass on (B, 4H)
        return sg[:, :H], sg[:, H:2 * H], th[:, 2 * H:3 * H], sg[:, 3 * H:]

    # TODO(synk): nn.LSTM inter-layer dropout (p=0.5) and the output Dropout(0.5)
    # are identity in eval mode; training-mode stochastic dropout not implemented.
    outs = []
    for t in range(T):                                        # fully unrolled, T = 8
        g0 = gi0[t * B:(t + 1) * B, :] + jnp.dot(
            h_l0, whh0, preferred_element_type=jnp.float32)
        i0, f0, gg0, o0 = split_gates(g0)
        c_l0 = f0 * c_l0 + i0 * gg0
        h_l0 = o0 * jnp.tanh(c_l0)

        xh = jnp.concatenate([h_l0, h_l1], axis=1)            # (B, 2H)
        g1 = jnp.dot(xh, w1, preferred_element_type=jnp.float32) + b1
        i1, f1, gg1, o1 = split_gates(g1)
        c_l1 = f1 * c_l1 + i1 * gg1
        h_l1 = o1 * jnp.tanh(c_l1)
        outs.append(h_l1)

    # ---- output projection; rows reassembled into (b*T + t) order --------------
    h_all = jnp.concatenate(
        [jnp.concatenate([outs[t][b:b + 1, :] for t in range(T)], axis=0)
         for b in range(B)], axis=0)                          # (B*T, H)
    logits_ref[...] = (jnp.dot(h_all, wout_ref[...],
                               preferred_element_type=jnp.float32) + bout_ref[...])
    hT_ref[0] = h_l0
    hT_ref[1] = h_l1
    cT_ref[0] = c_l0
    cT_ref[1] = c_l1


# ----------------------------------------------------------------------------
# Parameters (deterministic init; weights stored in (in, out) layout)
# ----------------------------------------------------------------------------
def init_params(key):
    D = SRC['embed_size_char']
    H = SRC['hidden_size']
    K = Y_K_SIZE
    V = len(SRC['word_vocab'])
    Cv = len(SRC['char_vocab'])
    keys = iter(jax.random.split(key, 32))

    def u(shape, s=0.05):
        return jax.random.uniform(next(keys), shape, jnp.float32, -s, s)

    emb = u((Cv, D), 0.1)
    emb = emb.at[0].set(0.0)                         # padding_idx=0

    cnn = []
    for c, w in FILTER_LIST:
        W = u((c, w, D))                             # conv weight (C, 1, w, D) squeezed
        Wf = W.reshape(c, w * D).T                   # (w*D, C)
        b = u((1, c))
        cnn.append((Wf, b))

    hw = dict(wt=u((K, K)), bt=u((1, K)), wf=u((K, K)), bf=u((1, K)))

    lstm_p = dict(                                   # biases stand in for b_ih + b_hh
        wih0=u((K, 4 * H)), whh0=u((H, 4 * H)), b0=u((1, 4 * H)),
        wih1=u((H, 4 * H)), whh1=u((H, 4 * H)), b1=u((1, 4 * H)),
    )

    out_p = dict(w=u((H, V)), b=u((1, V)))
    return dict(emb=emb, cnn=cnn, hw=hw, lstm=lstm_p, out=out_p)


def pack_params(params):
    """Merge / pad parameters into the fused-kernel layout (trace-time packing)."""
    D = SRC['embed_size_char']
    L = SRC['maxLen']
    w_max = max(SRC['widths'])
    C = Y_K_SIZE

    wcnn = jnp.zeros((w_max * D, C), jnp.float32)
    mask = np.zeros((L, C), np.float32)              # 0 where valid, -1e30 invalid
    b_parts = []
    col = 0
    for (c, w), (Wf, b) in zip(FILTER_LIST, params['cnn']):
        wcnn = wcnn.at[: w * D, col:col + c].set(Wf)  # zero-pad filter to width w_max
        if w > 1:
            mask[L - w + 1:, col:col + c] = -1e30     # positions past L - w are invalid
        b_parts.append(b)
        col += c

    hw = params['hw']
    lp = params['lstm']
    op = params['out']
    return dict(
        emb=params['emb'],
        wcnn=wcnn,
        bcnn=jnp.concatenate(b_parts, axis=1),
        mask=jnp.asarray(mask),
        whw=jnp.concatenate([hw['wt'], hw['wf']], axis=1),    # fused highway matmul
        bhw=jnp.concatenate([hw['bt'], hw['bf']], axis=1),
        wih0=lp['wih0'], whh0=lp['whh0'], b0=lp['b0'],
        w1=jnp.concatenate([lp['wih1'], lp['whh1']], axis=0),  # fused [x,h] matmul
        b1=lp['b1'],
        wout=op['w'], bout=op['b'])


# ----------------------------------------------------------------------------
# Forward pass: one pallas_call for the whole model
# ----------------------------------------------------------------------------
def char_aware_lm_forward(params, data_char_idx, h0, c0):
    assert SRC['num_layer'] == 2
    B, T, L = data_char_idx.shape
    D = SRC['embed_size_char']
    H = SRC['hidden_size']
    K = Y_K_SIZE
    V = len(SRC['word_vocab'])
    Cv = len(SRC['char_vocab'])
    w_max = max(SRC['widths'])
    N = B * T

    pk = pack_params(params)
    # time-major row order (row = t*B + b) keeps every in-kernel slice static/contiguous
    idx_tm = jnp.transpose(data_char_idx, (1, 0, 2)).reshape(N, L).astype(jnp.int32)

    kern = functools.partial(_fused_kernel, B=B, T=T, L=L, D=D, Cv=Cv, K=K, H=H,
                             w_max=w_max)
    logits, hT, cT = pl.pallas_call(
        kern,
        out_shape=(jax.ShapeDtypeStruct((N, V), jnp.float32),
                   jax.ShapeDtypeStruct((2, B, H), jnp.float32),
                   jax.ShapeDtypeStruct((2, B, H), jnp.float32)),
        in_specs=_vmem_specs(16),
        out_specs=tuple(_vmem_specs(3)),
    )(idx_tm, pk['emb'], pk['wcnn'], pk['bcnn'], pk['mask'],
      pk['whw'], pk['bhw'],
      pk['wih0'], pk['whh0'], pk['b0'], pk['w1'], pk['b1'],
      pk['wout'], pk['bout'], h0, c0)
    return logits, (hT, cT)


# ----------------------------------------------------------------------------
# Pure-JAX reference for the correctness check
# ----------------------------------------------------------------------------
def ref_forward(params, data_char_idx, h0, c0):
    B, T, L = data_char_idx.shape
    D = SRC['embed_size_char']
    H = SRC['hidden_size']
    N = B * T
    x = params['emb'][data_char_idx].reshape(N, L, D).astype(jnp.float32)

    y_parts = []
    for (c, w), (Wf, b) in zip(FILTER_LIST, params['cnn']):
        P = L - w + 1
        cols = [jnp.tanh(x[:, p:p + w, :].reshape(N, w * D) @ Wf + b)
                for p in range(P)]
        y_parts.append(jnp.max(jnp.stack(cols, axis=0), axis=0))
    y_k = jnp.concatenate(y_parts, axis=1)

    tg = jax.nn.sigmoid(y_k @ params['hw']['wt'] + params['hw']['bt'])
    z = tg * jnp.maximum(y_k @ params['hw']['wf'] + params['hw']['bf'], 0.0) + (1 - tg) * y_k
    z = z.reshape(B, T, -1)

    p = params['lstm']
    h = [h0[0], h0[1]]
    c = [c0[0], c0[1]]
    outs = []
    layer_w = [(p['wih0'], p['whh0'], p['b0']), (p['wih1'], p['whh1'], p['b1'])]
    for t in range(T):
        xt = z[:, t, :]
        for l, (wih, whh, b) in enumerate(layer_w):
            gates = xt @ wih + h[l] @ whh + b
            i = jax.nn.sigmoid(gates[:, :H])
            f = jax.nn.sigmoid(gates[:, H:2 * H])
            g = jnp.tanh(gates[:, 2 * H:3 * H])
            o = jax.nn.sigmoid(gates[:, 3 * H:])
            c[l] = f * c[l] + i * g
            h[l] = o * jnp.tanh(c[l])
            xt = h[l]
        outs.append(xt)
    out = jnp.stack(outs, axis=1).reshape(N, H)
    logits = out @ params['out']['w'] + params['out']['b']
    return logits, (jnp.stack(h), jnp.stack(c))


if __name__ == "__main__":
    key = jax.random.PRNGKey(0)
    kp, kd, kh, kc = jax.random.split(key, 4)
    params = init_params(kp)

    B, T, L = SRC['batch_size'], SRC['time_steps'], SRC['maxLen']
    H, Lyr = SRC['hidden_size'], SRC['num_layer']

    data_char_idx = jax.random.randint(kd, (B, T, L), 0, len(SRC['char_vocab']),
                                       dtype=jnp.int32)
    h0 = 0.1 * jax.random.normal(kh, (Lyr, B, H), jnp.float32)
    c0 = 0.1 * jax.random.normal(kc, (Lyr, B, H), jnp.float32)

    fwd = jax.jit(char_aware_lm_forward)
    logits, (hT, cT) = jax.block_until_ready(fwd(params, data_char_idx, h0, c0))

    ref_logits, (ref_hT, ref_cT) = ref_forward(params, data_char_idx, h0, c0)
    assert logits.shape == (B * T, len(SRC['word_vocab']))
    assert jnp.allclose(logits, ref_logits, atol=2e-3, rtol=2e-3)
    assert jnp.allclose(hT, ref_hT, atol=2e-3, rtol=2e-3)
    assert jnp.allclose(cT, ref_cT, atol=2e-3, rtol=2e-3)
    print("KERNEL_OK")
</pallas_src>

<mosaic_0001>
module attributes {stable_mosaic.version = 11 : i64} {
  func.func @_fused_kernel(%arg0: memref<16x10xi32, #tpu.memory_space<vmem>>, %arg1: memref<20x8xf32, #tpu.memory_space<vmem>>, %arg2: memref<24x24xf32, #tpu.memory_space<vmem>>, %arg3: memref<1x24xf32, #tpu.memory_space<vmem>>, %arg4: memref<10x24xf32, #tpu.memory_space<vmem>>, %arg5: memref<24x48xf32, #tpu.memory_space<vmem>>, %arg6: memref<1x48xf32, #tpu.memory_space<vmem>>, %arg7: memref<24x128xf32, #tpu.memory_space<vmem>>, %arg8: memref<32x128xf32, #tpu.memory_space<vmem>>, %arg9: memref<1x128xf32, #tpu.memory_space<vmem>>, %arg10: memref<64x128xf32, #tpu.memory_space<vmem>>, %arg11: memref<1x128xf32, #tpu.memory_space<vmem>>, %arg12: memref<32x30xf32, #tpu.memory_space<vmem>>, %arg13: memref<1x30xf32, #tpu.memory_space<vmem>>, %arg14: memref<2x2x32xf32, #tpu.memory_space<vmem>>, %arg15: memref<2x2x32xf32, #tpu.memory_space<vmem>>, %arg16: memref<16x30xf32, #tpu.memory_space<vmem>>, %arg17: memref<2x2x32xf32, #tpu.memory_space<vmem>>, %arg18: memref<2x2x32xf32, #tpu.memory_space<vmem>>) attributes {dimension_semantics = [], scalar_prefetch = 0 : i64, scratch_operands = 0 : i64, tpu.core_type = #tpu.core_type<tc>} {
    %c0 = arith.constant 0 : index
    %c0_0 = arith.constant 0 : index
    %0 = vector.load %arg0[%c0, %c0_0] : memref<16x10xi32, #tpu.memory_space<vmem>>, vector<16x10xi32>
    %c0_1 = arith.constant 0 : index
    %c0_2 = arith.constant 0 : index
    %1 = vector.load %arg1[%c0_1, %c0_2] : memref<20x8xf32, #tpu.memory_space<vmem>>, vector<20x8xf32>
    %2 = tpu.iota {dimensions = array<i32: 1>} : vector<16x20xi32>
    %3 = vector.extract_strided_slice %0 {offsets = [0, 0], sizes = [16, 1], strides = [1, 1]} : vector<16x10xi32> to vector<16x1xi32>
    %4 = vector.broadcast %3 : vector<16x1xi32> to vector<16x20xi32>
    %5 = arith.cmpi eq, %2, %4 : vector<16x20xi32>
    %6 = arith.extui %5 : vector<16x20xi1> to vector<16x20xi32>
    %7 = arith.sitofp %6 : vector<16x20xi32> to vector<16x20xf32>
    %8 = vector.extract_strided_slice %0 {offsets = [0, 1], sizes = [16, 1], strides = [1, 1]} : vector<16x10xi32> to vector<16x1xi32>
    %9 = vector.broadcast %8 : vector<16x1xi32> to vector<16x20xi32>
    %10 = arith.cmpi eq, %2, %9 : vector<16x20xi32>
    %11 = arith.extui %10 : vector<16x20xi1> to vector<16x20xi32>
    %12 = arith.sitofp %11 : vector<16x20xi32> to vector<16x20xf32>
    %13 = vector.extract_strided_slice %0 {offsets = [0, 2], sizes = [16, 1], strides = [1, 1]} : vector<16x10xi32> to vector<16x1xi32>
    %14 = vector.broadcast %13 : vector<16x1xi32> to vector<16x20xi32>
    %15 = arith.cmpi eq, %2, %14 : vector<16x20xi32>
    %16 = arith.extui %15 : vector<16x20xi1> to vector<16x20xi32>
    %17 = arith.sitofp %16 : vector<16x20xi32> to vector<16x20xf32>
    %18 = vector.extract_strided_slice %0 {offsets = [0, 3], sizes = [16, 1], strides = [1, 1]} : vector<16x10xi32> to vector<16x1xi32>
    %19 = vector.broadcast %18 : vector<16x1xi32> to vector<16x20xi32>
    %20 = arith.cmpi eq, %2, %19 : vector<16x20xi32>
    %21 = arith.extui %20 : vector<16x20xi1> to vector<16x20xi32>
    %22 = arith.sitofp %21 : vector<16x20xi32> to vector<16x20xf32>
    %23 = vector.extract_strided_slice %0 {offsets = [0, 4], sizes = [16, 1], strides = [1, 1]} : vector<16x10xi32> to vector<16x1xi32>
    %24 = vector.broadcast %23 : vector<16x1xi32> to vector<16x20xi32>
    %25 = arith.cmpi eq, %2, %24 : vector<16x20xi32>
    %26 = arith.extui %25 : vector<16x20xi1> to vector<16x20xi32>
    %27 = arith.sitofp %26 : vector<16x20xi32> to vector<16x20xf32>
    %28 = vector.extract_strided_slice %0 {offsets = [0, 5], sizes = [16, 1], strides = [1, 1]} : vector<16x10xi32> to vector<16x1xi32>
    %29 = vector.broadcast %28 : vector<16x1xi32> to vector<16x20xi32>
    %30 = arith.cmpi eq, %2, %29 : vector<16x20xi32>
    %31 = arith.extui %30 : vector<16x20xi1> to vector<16x20xi32>
    %32 = arith.sitofp %31 : vector<16x20xi32> to vector<16x20xf32>
    %33 = vector.extract_strided_slice %0 {offsets = [0, 6], sizes = [16, 1], strides = [1, 1]} : vector<16x10xi32> to vector<16x1xi32>
    %34 = vector.broadcast %33 : vector<16x1xi32> to vector<16x20xi32>
    %35 = arith.cmpi eq, %2, %34 : vector<16x20xi32>
    %36 = arith.extui %35 : vector<16x20xi1> to vector<16x20xi32>
    %37 = arith.sitofp %36 : vector<16x20xi32> to vector<16x20xf32>
    %38 = vector.extract_strided_slice %0 {offsets = [0, 7], sizes = [16, 1], strides = [1, 1]} : vector<16x10xi32> to vector<16x1xi32>
    %39 = vector.broadcast %38 : vector<16x1xi32> to vector<16x20xi32>
    %40 = arith.cmpi eq, %2, %39 : vector<16x20xi32>
    %41 = arith.extui %40 : vector<16x20xi1> to vector<16x20xi32>
    %42 = arith.sitofp %41 : vector<16x20xi32> to vector<16x20xf32>
    %43 = vector.extract_strided_slice %0 {offsets = [0, 8], sizes = [16, 1], strides = [1, 1]} : vector<16x10xi32> to vector<16x1xi32>
    %44 = vector.broadcast %43 : vector<16x1xi32> to vector<16x20xi32>
    %45 = arith.cmpi eq, %2, %44 : vector<16x20xi32>
    %46 = arith.extui %45 : vector<16x20xi1> to vector<16x20xi32>
    %47 = arith.sitofp %46 : vector<16x20xi32> to vector<16x20xf32>
    %48 = vector.extract_strided_slice %0 {offsets = [0, 9], sizes = [16, 1], strides = [1, 1]} : vector<16x10xi32> to vector<16x1xi32>
    %49 = vector.broadcast %48 : vector<16x1xi32> to vector<16x20xi32>
    %50 = arith.cmpi eq, %2, %49 : vector<16x20xi32>
    %51 = arith.extui %50 : vector<16x20xi1> to vector<16x20xi32>
    %52 = arith.sitofp %51 : vector<16x20xi32> to vector<16x20xf32>
    %53 = tpu.concatenate %7, %12, %17, %22, %27, %32, %37, %42, %47, %52 in 0 : vector<16x20xf32>, vector<16x20xf32>, vector<16x20xf32>, vector<16x20xf32>, vector<16x20xf32>, vector<16x20xf32>, vector<16x20xf32>, vector<16x20xf32>, vector<16x20xf32>, vector<16x20xf32> -> vector<160x20xf32>
    %cst = arith.constant dense<0.000000e+00> : vector<160x8xf32>
    %54 = tpu.matmul %53, %1, %cst {dimension_numbers = #tpu.dot_dimension_numbers<[1], [0], [0], [1], [0, 0, 1, 1], [], []>} : vector<160x20xf32>, vector<20x8xf32>, vector<160x8xf32> -> vector<160x8xf32>
    %55 = vector.extract_strided_slice %54 {offsets = [0, 0], sizes = [16, 8], strides = [1, 1]} : vector<160x8xf32> to vector<16x8xf32>
    %56 = vector.extract_strided_slice %54 {offsets = [16, 0], sizes = [16, 8], strides = [1, 1]} : vector<160x8xf32> to vector<16x8xf32>
    %57 = vector.extract_strided_slice %54 {offsets = [32, 0], sizes = [16, 8], strides = [1, 1]} : vector<160x8xf32> to vector<16x8xf32>
    %58 = vector.extract_strided_slice %54 {offsets = [48, 0], sizes = [16, 8], strides = [1, 1]} : vector<160x8xf32> to vector<16x8xf32>
    %59 = vector.extract_strided_slice %54 {offsets = [64, 0], sizes = [16, 8], strides = [1, 1]} : vector<160x8xf32> to vector<16x8xf32>
    %60 = vector.extract_strided_slice %54 {offsets = [80, 0], sizes = [16, 8], strides = [1, 1]} : vector<160x8xf32> to vector<16x8xf32>
    %61 = vector.extract_strided_slice %54 {offsets = [96, 0], sizes = [16, 8], strides = [1, 1]} : vector<160x8xf32> to vector<16x8xf32>
    %62 = vector.extract_strided_slice %54 {offsets = [112, 0], sizes = [16, 8], strides = [1, 1]} : vector<160x8xf32> to vector<16x8xf32>
    %63 = vector.extract_strided_slice %54 {offsets = [128, 0], sizes = [16, 8], strides = [1, 1]} : vector<160x8xf32> to vector<16x8xf32>
    %64 = vector.extract_strided_slice %54 {offsets = [144, 0], sizes = [16, 8], strides = [1, 1]} : vector<160x8xf32> to vector<16x8xf32>
    %cst_3 = arith.constant 0.000000e+00 : f32
    %65 = vector.broadcast %cst_3 : f32 to vector<16x8xf32>
    %66 = tpu.concatenate %55, %56, %57 in 1 : vector<16x8xf32>, vector<16x8xf32>, vector<16x8xf32> -> vector<16x24xf32>
    %67 = tpu.concatenate %56, %57, %58 in 1 : vector<16x8xf32>, vector<16x8xf32>, vector<16x8xf32> -> vector<16x24xf32>
    %68 = tpu.concatenate %57, %58, %59 in 1 : vector<16x8xf32>, vector<16x8xf32>, vector<16x8xf32> -> vector<16x24xf32>
    %69 = tpu.concatenate %58, %59, %60 in 1 : vector<16x8xf32>, vector<16x8xf32>, vector<16x8xf32> -> vector<16x24xf32>
    %70 = tpu.concatenate %59, %60, %61 in 1 : vector<16x8xf32>, vector<16x8xf32>, vector<16x8xf32> -> vector<16x24xf32>
    %71 = tpu.concatenate %60, %61, %62 in 1 : vector<16x8xf32>, vector<16x8xf32>, vector<16x8xf32> -> vector<16x24xf32>
    %72 = tpu.concatenate %61, %62, %63 in 1 : vector<16x8xf32>, vector<16x8xf32>, vector<16x8xf32> -> vector<16x24xf32>
    %73 = tpu.concatenate %62, %63, %64 in 1 : vector<16x8xf32>, vector<16x8xf32>, vector<16x8xf32> -> vector<16x24xf32>
    %74 = tpu.concatenate %63, %64, %65 in 1 : vector<16x8xf32>, vector<16x8xf32>, vector<16x8xf32> -> vector<16x24xf32>
    %75 = tpu.concatenate %64, %65, %65 in 1 : vector<16x8xf32>, vector<16x8xf32>, vector<16x8xf32> -> vector<16x24xf32>
    %76 = tpu.concatenate %66, %67, %68, %69, %70, %71, %72, %73, %74, %75 in 0 : vector<16x24xf32>, vector<16x24xf32>, vector<16x24xf32>, vector<16x24xf32>, vector<16x24xf32>, vector<16x24xf32>, vector<16x24xf32>, vector<16x24xf32>, vector<16x24xf32>, vector<16x24xf32> -> vector<160x24xf32>
    %c0_4 = arith.constant 0 : index
    %c0_5 = arith.constant 0 : index
    %77 = vector.load %arg2[%c0_4, %c0_5] : memref<24x24xf32, #tpu.memory_space<vmem>>, vector<24x24xf32>
    %cst_6 = arith.constant dense<0.000000e+00> : vector<160x24xf32>
    %78 = tpu.matmul %76, %77, %cst_6 {dimension_numbers = #tpu.dot_dimension_numbers<[1], [0], [0], [1], [0, 0, 1, 1], [], []>} : vector<160x24xf32>, vector<24x24xf32>, vector<160x24xf32> -> vector<160x24xf32>
    %c0_7 = arith.constant 0 : index
    %c0_8 = arith.constant 0 : index
    %79 = vector.load %arg3[%c0_7, %c0_8] : memref<1x24xf32, #tpu.memory_space<vmem>>, vector<1x24xf32>
    %80 = vector.broadcast %79 : vector<1x24xf32> to vector<160x24xf32>
    %81 = arith.addf %78, %80 : vector<160x24xf32>
    %82 = math.tanh %81 : vector<160x24xf32>
    %cst_9 = arith.constant -1.000000e+30 : f32
    %83 = vector.broadcast %cst_9 : f32 to vector<16x24xf32>
    %84 = vector.extract_strided_slice %82 {offsets = [0, 0], sizes = [16, 24], strides = [1, 1]} : vector<160x24xf32> to vector<16x24xf32>
    %c0_10 = arith.constant 0 : index
    %c0_11 = arith.constant 0 : index
    %85 = vector.load %arg4[%c0_10, %c0_11] : memref<10x24xf32, #tpu.memory_space<vmem>>, vector<1x24xf32>
    %86 = vector.broadcast %85 : vector<1x24xf32> to vector<16x24xf32>
    %87 = arith.addf %84, %86 : vector<16x24xf32>
    %88 = arith.maximumf %83, %87 : vector<16x24xf32>
    %89 = vector.extract_strided_slice %82 {offsets = [16, 0], sizes = [16, 24], strides = [1, 1]} : vector<160x24xf32> to vector<16x24xf32>
    %c1 = arith.constant 1 : index
    %c0_12 = arith.constant 0 : index
    %90 = vector.load %arg4[%c1, %c0_12] : memref<10x24xf32, #tpu.memory_space<vmem>>, vector<1x24xf32>
    %91 = vector.broadcast %90 : vector<1x24xf32> to vector<16x24xf32>
    %92 = arith.addf %89, %91 : vector<16x24xf32>
    %93 = arith.maximumf %88, %92 : vector<16x24xf32>
    %94 = vector.extract_strided_slice %82 {offsets = [32, 0], sizes = [16, 24], strides = [1, 1]} : vector<160x24xf32> to vector<16x24xf32>
    %c2 = arith.constant 2 : index
    %c0_13 = arith.constant 0 : index
    %95 = vector.load %arg4[%c2, %c0_13] : memref<10x24xf32, #tpu.memory_space<vmem>>, vector<1x24xf32>
    %96 = vector.broadcast %95 : vector<1x24xf32> to vector<16x24xf32>
    %97 = arith.addf %94, %96 : vector<16x24xf32>
    %98 = arith.maximumf %93, %97 : vector<16x24xf32>
    %99 = vector.extract_strided_slice %82 {offsets = [48, 0], sizes = [16, 24], strides = [1, 1]} : vector<160x24xf32> to vector<16x24xf32>
    %c3 = arith.constant 3 : index
    %c0_14 = arith.constant 0 : index
    %100 = vector.load %arg4[%c3, %c0_14] : memref<10x24xf32, #tpu.memory_space<vmem>>, vector<1x24xf32>
    %101 = vector.broadcast %100 : vector<1x24xf32> to vector<16x24xf32>
    %102 = arith.addf %99, %101 : vector<16x24xf32>
    %103 = arith.maximumf %98, %102 : vector<16x24xf32>
    %104 = vector.extract_strided_slice %82 {offsets = [64, 0], sizes = [16, 24], strides = [1, 1]} : vector<160x24xf32> to vector<16x24xf32>
    %c4 = arith.constant 4 : index
    %c0_15 = arith.constant 0 : index
    %105 = vector.load %arg4[%c4, %c0_15] : memref<10x24xf32, #tpu.memory_space<vmem>>, vector<1x24xf32>
    %106 = vector.broadcast %105 : vector<1x24xf32> to vector<16x24xf32>
    %107 = arith.addf %104, %106 : vector<16x24xf32>
    %108 = arith.maximumf %103, %107 : vector<16x24xf32>
    %109 = vector.extract_strided_slice %82 {offsets = [80, 0], sizes = [16, 24], strides = [1, 1]} : vector<160x24xf32> to vector<16x24xf32>
    %c5 = arith.constant 5 : index
    %c0_16 = arith.constant 0 : index
    %110 = vector.load %arg4[%c5, %c0_16] : memref<10x24xf32, #tpu.memory_space<vmem>>, vector<1x24xf32>
    %111 = vector.broadcast %110 : vector<1x24xf32> to vector<16x24xf32>
    %112 = arith.addf %109, %111 : vector<16x24xf32>
    %113 = arith.maximumf %108, %112 : vector<16x24xf32>
    %114 = vector.extract_strided_slice %82 {offsets = [96, 0], sizes = [16, 24], strides = [1, 1]} : vector<160x24xf32> to vector<16x24xf32>
    %c6 = arith.constant 6 : index
    %c0_17 = arith.constant 0 : index
    %115 = vector.load %arg4[%c6, %c0_17] : memref<10x24xf32, #tpu.memory_space<vmem>>, vector<1x24xf32>
    %116 = vector.broadcast %115 : vector<1x24xf32> to vector<16x24xf32>
    %117 = arith.addf %114, %116 : vector<16x24xf32>
    %118 = arith.maximumf %113, %117 : vector<16x24xf32>
    %119 = vector.extract_strided_slice %82 {offsets = [112, 0], sizes = [16, 24], strides = [1, 1]} : vector<160x24xf32> to vector<16x24xf32>
    %c7 = arith.constant 7 : index
    %c0_18 = arith.constant 0 : index
    %120 = vector.load %arg4[%c7, %c0_18] : memref<10x24xf32, #tpu.memory_space<vmem>>, vector<1x24xf32>
    %121 = vector.broadcast %120 : vector<1x24xf32> to vector<16x24xf32>
    %122 = arith.addf %119, %121 : vector<16x24xf32>
    %123 = arith.maximumf %118, %122 : vector<16x24xf32>
    %124 = vector.extract_strided_slice %82 {offsets = [128, 0], sizes = [16, 24], strides = [1, 1]} : vector<160x24xf32> to vector<16x24xf32>
    %c8 = arith.constant 8 : index
    %c0_19 = arith.constant 0 : index
    %125 = vector.load %arg4[%c8, %c0_19] : memref<10x24xf32, #tpu.memory_space<vmem>>, vector<1x24xf32>
    %126 = vector.broadcast %125 : vector<1x24xf32> to vector<16x24xf32>
    %127 = arith.addf %124, %126 : vector<16x24xf32>
    %128 = arith.maximumf %123, %127 : vector<16x24xf32>
    %129 = vector.extract_strided_slice %82 {offsets = [144, 0], sizes = [16, 24], strides = [1, 1]} : vector<160x24xf32> to vector<16x24xf32>
    %c9 = arith.constant 9 : index
    %c0_20 = arith.constant 0 : index
    %130 = vector.load %arg4[%c9, %c0_20] : memref<10x24xf32, #tpu.memory_space<vmem>>, vector<1x24xf32>
    %131 = vector.broadcast %130 : vector<1x24xf32> to vector<16x24xf32>
    %132 = arith.addf %129, %131 : vector<16x24xf32>
    %133 = arith.maximumf %128, %132 : vector<16x24xf32>
    %c0_21 = arith.constant 0 : index
    %c0_22 = arith.constant 0 : index
    %134 = vector.load %arg5[%c0_21, %c0_22] : memref<24x48xf32, #tpu.memory_space<vmem>>, vector<24x48xf32>
    %cst_23 = arith.constant dense<0.000000e+00> : vector<16x48xf32>
    %135 = tpu.matmul %133, %134, %cst_23 {dimension_numbers = #tpu.dot_dimension_numbers<[1], [0], [0], [1], [0, 0, 1, 1], [], []>} : vector<16x24xf32>, vector<24x48xf32>, vector<16x48xf32> -> vector<16x48xf32>
    %c0_24 = arith.constant 0 : index
    %c0_25 = arith.constant 0 : index
    %136 = vector.load %arg6[%c0_24, %c0_25] : memref<1x48xf32, #tpu.memory_space<vmem>>, vector<1x48xf32>
    %137 = vector.broadcast %136 : vector<1x48xf32> to vector<16x48xf32>
    %138 = arith.addf %135, %137 : vector<16x48xf32>
    %139 = vector.extract_strided_slice %138 {offsets = [0, 0], sizes = [16, 24], strides = [1, 1]} : vector<16x48xf32> to vector<16x24xf32>
    %140 = arith.negf %139 : vector<16x24xf32>
    %141 = math.exp %140 : vector<16x24xf32>
    %cst_26 = arith.constant 1.000000e+00 : f32
    %142 = vector.broadcast %cst_26 : f32 to vector<16x24xf32>
    %143 = arith.addf %142, %141 : vector<16x24xf32>
    %144 = arith.divf %142, %143 : vector<16x24xf32>
    %145 = vector.extract_strided_slice %138 {offsets = [0, 24], sizes = [16, 24], strides = [1, 1]} : vector<16x48xf32> to vector<16x24xf32>
    %cst_27 = arith.constant 0.000000e+00 : f32
    %146 = vector.broadcast %cst_27 : f32 to vector<16x24xf32>
    %147 = arith.maximumf %145, %146 : vector<16x24xf32>
    %148 = arith.mulf %144, %147 : vector<16x24xf32>
    %cst_28 = arith.constant 1.000000e+00 : f32
    %149 = vector.broadcast %cst_28 : f32 to vector<16x24xf32>
    %150 = arith.subf %149, %144 : vector<16x24xf32>
    %151 = arith.mulf %150, %133 : vector<16x24xf32>
    %152 = arith.addf %148, %151 : vector<16x24xf32>
    %c0_29 = arith.constant 0 : index
    %c0_30 = arith.constant 0 : index
    %153 = vector.load %arg7[%c0_29, %c0_30] : memref<24x128xf32, #tpu.memory_space<vmem>>, vector<24x128xf32>
    %cst_31 = arith.constant dense<0.000000e+00> : vector<16x128xf32>
    %154 = tpu.matmul %152, %153, %cst_31 {dimension_numbers = #tpu.dot_dimension_numbers<[1], [0], [0], [1], [0, 0, 1, 1], [], []>} : vector<16x24xf32>, vector<24x128xf32>, vector<16x128xf32> -> vector<16x128xf32>
    %c0_32 = arith.constant 0 : index
    %c0_33 = arith.constant 0 : index
    %155 = vector.load %arg9[%c0_32, %c0_33] : memref<1x128xf32, #tpu.memory_space<vmem>>, vector<1x128xf32>
    %156 = vector.broadcast %155 : vector<1x128xf32> to vector<16x128xf32>
    %157 = arith.addf %154, %156 : vector<16x128xf32>
    %c0_34 = arith.constant 0 : index
    %c0_35 = arith.constant 0 : index
    %158 = vector.load %arg8[%c0_34, %c0_35] : memref<32x128xf32, #tpu.memory_space<vmem>>, vector<32x128xf32>
    %c0_36 = arith.constant 0 : index
    %c0_37 = arith.constant 0 : index
    %159 = vector.load %arg10[%c0_36, %c0_37] : memref<64x128xf32, #tpu.memory_space<vmem>>, vector<64x128xf32>
    %c0_38 = arith.constant 0 : index
    %c0_39 = arith.constant 0 : index
    %160 = vector.load %arg11[%c0_38, %c0_39] : memref<1x128xf32, #tpu.memory_space<vmem>>, vector<1x128xf32>
    %161 = vector.shape_cast %160 : vector<1x128xf32> to vector<1x128xf32>
    %162 = vector.broadcast %161 : vector<1x128xf32> to vector<2x128xf32>
    %c0_40 = arith.constant 0 : index
    %c0_41 = arith.constant 0 : index
    %c0_42 = arith.constant 0 : index
    %163 = vector.load %arg14[%c0_40, %c0_41, %c0_42] : memref<2x2x32xf32, #tpu.memory_space<vmem>>, vector<1x2x32xf32>
    %164 = vector.shape_cast %163 : vector<1x2x32xf32> to vector<2x32xf32>
    %c1_43 = arith.constant 1 : index
    %c0_44 = arith.constant 0 : index
    %c0_45 = arith.constant 0 : index
    %165 = vector.load %arg14[%c1_43, %c0_44, %c0_45] : memref<2x2x32xf32, #tpu.memory_space<vmem>>, vector<1x2x32xf32>
    %166 = vector.shape_cast %165 : vector<1x2x32xf32> to vector<2x32xf32>
    %c0_46 = arith.constant 0 : index
    %c0_47 = arith.constant 0 : index
    %c0_48 = arith.constant 0 : index
    %167 = vector.load %arg15[%c0_46, %c0_47, %c0_48] : memref<2x2x32xf32, #tpu.memory_space<vmem>>, vector<1x2x32xf32>
    %168 = vector.shape_cast %167 : vector<1x2x32xf32> to vector<2x32xf32>
    %c1_49 = arith.constant 1 : index
    %c0_50 = arith.constant 0 : index
    %c0_51 = arith.constant 0 : index
    %169 = vector.load %arg15[%c1_49, %c0_50, %c0_51] : memref<2x2x32xf32, #tpu.memory_space<vmem>>, vector<1x2x32xf32>
    %170 = vector.shape_cast %169 : vector<1x2x32xf32> to vector<2x32xf32>
    %171 = vector.extract_strided_slice %157 {offsets = [0, 0], sizes = [2, 128], strides = [1, 1]} : vector<16x128xf32> to vector<2x128xf32>
    %cst_52 = arith.constant dense<0.000000e+00> : vector<2x128xf32>
    %172 = tpu.matmul %164, %158, %cst_52 {dimension_numbers = #tpu.dot_dimension_numbers<[1], [0], [0], [1], [0, 0, 1, 1], [], []>} : vector<2x32xf32>, vector<32x128xf32>, vector<2x128xf32> -> vector<2x128xf32>
    %173 = arith.addf %171, %172 : vector<2x128xf32>
    %174 = arith.negf %173 : vector<2x128xf32>
    %175 = math.exp %174 : vector<2x128xf32>
    %cst_53 = arith.constant 1.000000e+00 : f32
    %176 = vector.broadcast %cst_53 : f32 to vector<2x128xf32>
    %177 = arith.addf %176, %175 : vector<2x128xf32>
    %178 = arith.divf %176, %177 : vector<2x128xf32>
    %179 = math.tanh %173 : vector<2x128xf32>
    %180 = vector.extract_strided_slice %178 {offsets = [0, 0], sizes = [2, 32], strides = [1, 1]} : vector<2x128xf32> to vector<2x32xf32>
    %181 = vector.extract_strided_slice %178 {offsets = [0, 32], sizes = [2, 32], strides = [1, 1]} : vector<2x128xf32> to vector<2x32xf32>
    %182 = vector.extract_strided_slice %179 {offsets = [0, 64], sizes = [2, 32], strides = [1, 1]} : vector<2x128xf32> to vector<2x32xf32>
    %183 = vector.extract_strided_slice %178 {offsets = [0, 96], sizes = [2, 32], strides = [1, 1]} : vector<2x128xf32> to vector<2x32xf32>
    %184 = arith.mulf %181, %168 : vector<2x32xf32>
    %185 = arith.mulf %180, %182 : vector<2x32xf32>
    %186 = arith.addf %184, %185 : vector<2x32xf32>
    %187 = math.tanh %186 : vector<2x32xf32>
    %188 = arith.mulf %183, %187 : vector<2x32xf32>
    %189 = tpu.concatenate %188, %166 in 1 : vector<2x32xf32>, vector<2x32xf32> -> vector<2x64xf32>
    %cst_54 = arith.constant dense<0.000000e+00> : vector<2x128xf32>
    %190 = tpu.matmul %189, %159, %cst_54 {dimension_numbers = #tpu.dot_dimension_numbers<[1], [0], [0], [1], [0, 0, 1, 1], [], []>} : vector<2x64xf32>, vector<64x128xf32>, vector<2x128xf32> -> vector<2x128xf32>
    %191 = arith.addf %190, %162 : vector<2x128xf32>
    %192 = arith.negf %191 : vector<2x128xf32>
    %193 = math.exp %192 : vector<2x128xf32>
    %cst_55 = arith.constant 1.000000e+00 : f32
    %194 = vector.broadcast %cst_55 : f32 to vector<2x128xf32>
    %195 = arith.addf %194, %193 : vector<2x128xf32>
    %196 = arith.divf %194, %195 : vector<2x128xf32>
    %197 = math.tanh %191 : vector<2x128xf32>
    %198 = vector.extract_strided_slice %196 {offsets = [0, 0], sizes = [2, 32], strides = [1, 1]} : vector<2x128xf32> to vector<2x32xf32>
    %199 = vector.extract_strided_slice %196 {offsets = [0, 32], sizes = [2, 32], strides = [1, 1]} : vector<2x128xf32> to vector<2x32xf32>
    %200 = vector.extract_strided_slice %197 {offsets = [0, 64], sizes = [2, 32], strides = [1, 1]} : vector<2x128xf32> to vector<2x32xf32>
    %201 = vector.extract_strided_slice %196 {offsets = [0, 96], sizes = [2, 32], strides = [1, 1]} : vector<2x128xf32> to vector<2x32xf32>
    %202 = arith.mulf %199, %170 : vector<2x32xf32>
    %203 = arith.mulf %198, %200 : vector<2x32xf32>
    %204 = arith.addf %202, %203 : vector<2x32xf32>
    %205 = math.tanh %204 : vector<2x32xf32>
    %206 = arith.mulf %201, %205 : vector<2x32xf32>
    %207 = vector.extract_strided_slice %157 {offsets = [2, 0], sizes = [2, 128], strides = [1, 1]} : vector<16x128xf32> to vector<2x128xf32>
    %cst_56 = arith.constant dense<0.000000e+00> : vector<2x128xf32>
    %208 = tpu.matmul %188, %158, %cst_56 {dimension_numbers = #tpu.dot_dimension_numbers<[1], [0], [0], [1], [0, 0, 1, 1], [], []>} : vector<2x32xf32>, vector<32x128xf32>, vector<2x128xf32> -> vector<2x128xf32>
    %209 = arith.addf %207, %208 : vector<2x128xf32>
    %210 = arith.negf %209 : vector<2x128xf32>
    %211 = math.exp %210 : vector<2x128xf32>
    %cst_57 = arith.constant 1.000000e+00 : f32
    %212 = vector.broadcast %cst_57 : f32 to vector<2x128xf32>
    %213 = arith.addf %212, %211 : vector<2x128xf32>
    %214 = arith.divf %212, %213 : vector<2x128xf32>
    %215 = math.tanh %209 : vector<2x128xf32>
    %216 = vector.extract_strided_slice %214 {offsets = [0, 0], sizes = [2, 32], strides = [1, 1]} : vector<2x128xf32> to vector<2x32xf32>
    %217 = vector.extract_strided_slice %214 {offsets = [0, 32], sizes = [2, 32], strides = [1, 1]} : vector<2x128xf32> to vector<2x32xf32>
    %218 = vector.extract_strided_slice %215 {offsets = [0, 64], sizes = [2, 32], strides = [1, 1]} : vector<2x128xf32> to vector<2x32xf32>
    %219 = vector.extract_strided_slice %214 {offsets = [0, 96], sizes = [2, 32], strides = [1, 1]} : vector<2x128xf32> to vector<2x32xf32>
    %220 = arith.mulf %217, %186 : vector<2x32xf32>
    %221 = arith.mulf %216, %218 : vector<2x32xf32>
    %222 = arith.addf %220, %221 : vector<2x32xf32>
    %223 = math.tanh %222 : vector<2x32xf32>
    %224 = arith.mulf %219, %223 : vector<2x32xf32>
    %225 = tpu.concatenate %224, %206 in 1 : vector<2x32xf32>, vector<2x32xf32> -> vector<2x64xf32>
    %cst_58 = arith.constant dense<0.000000e+00> : vector<2x128xf32>
    %226 = tpu.matmul %225, %159, %cst_58 {dimension_numbers = #tpu.dot_dimension_numbers<[1], [0], [0], [1], [0, 0, 1, 1], [], []>} : vector<2x64xf32>, vector<64x128xf32>, vector<2x128xf32> -> vector<2x128xf32>
    %227 = arith.addf %226, %162 : vector<2x128xf32>
    %228 = arith.negf %227 : vector<2x128xf32>
    %229 = math.exp %228 : vector<2x128xf32>
    %cst_59 = arith.constant 1.000000e+00 : f32
    %230 = vector.broadcast %cst_59 : f32 to vector<2x128xf32>
    %231 = arith.addf %230, %229 : vector<2x128xf32>
    %232 = arith.divf %230, %231 : vector<2x128xf32>
    %233 = math.tanh %227 : vector<2x128xf32>
    %234 = vector.extract_strided_slice %232 {offsets = [0, 0], sizes = [2, 32], strides = [1, 1]} : vector<2x128xf32> to vector<2x32xf32>
    %235 = vector.extract_strided_slice %232 {offsets = [0, 32], sizes = [2, 32], strides = [1, 1]} : vector<2x128xf32> to vector<2x32xf32>
    %236 = vector.extract_strided_slice %233 {offsets = [0, 64], sizes = [2, 32], strides = [1, 1]} : vector<2x128xf32> to vector<2x32xf32>
    %237 = vector.extract_strided_slice %232 {offsets = [0, 96], sizes = [2, 32], strides = [1, 1]} : vector<2x128xf32> to vector<2x32xf32>
    %238 = arith.mulf %235, %204 : vector<2x32xf32>
    %239 = arith.mulf %234, %236 : vector<2x32xf32>
    %240 = arith.addf %238, %239 : vector<2x32xf32>
    %241 = math.tanh %240 : vector<2x32xf32>
    %242 = arith.mulf %237, %241 : vector<2x32xf32>
    %243 = vector.extract_strided_slice %157 {offsets = [4, 0], sizes = [2, 128], strides = [1, 1]} : vector<16x128xf32> to vector<2x128xf32>
    %cst_60 = arith.constant dense<0.000000e+00> : vector<2x128xf32>
    %244 = tpu.matmul %224, %158, %cst_60 {dimension_numbers = #tpu.dot_dimension_numbers<[1], [0], [0], [1], [0, 0, 1, 1], [], []>} : vector<2x32xf32>, vector<32x128xf32>, vector<2x128xf32> -> vector<2x128xf32>
    %245 = arith.addf %243, %244 : vector<2x128xf32>
    %246 = arith.negf %245 : vector<2x128xf32>
    %247 = math.exp %246 : vector<2x128xf32>
    %cst_61 = arith.constant 1.000000e+00 : f32
    %248 = vector.broadcast %cst_61 : f32 to vector<2x128xf32>
    %249 = arith.addf %248, %247 : vector<2x128xf32>
    %250 = arith.divf %248, %249 : vector<2x128xf32>
    %251 = math.tanh %245 : vector<2x128xf32>
    %252 = vector.extract_strided_slice %250 {offsets = [0, 0], sizes = [2, 32], strides = [1, 1]} : vector<2x128xf32> to vector<2x32xf32>
    %253 = vector.extract_strided_slice %250 {offsets = [0, 32], sizes = [2, 32], strides = [1, 1]} : vector<2x128xf32> to vector<2x32xf32>
    %254 = vector.extract_strided_slice %251 {offsets = [0, 64], sizes = [2, 32], strides = [1, 1]} : vector<2x128xf32> to vector<2x32xf32>
    %255 = vector.extract_strided_slice %250 {offsets = [0, 96], sizes = [2, 32], strides = [1, 1]} : vector<2x128xf32> to vector<2x32xf32>
    %256 = arith.mulf %253, %222 : vector<2x32xf32>
    %257 = arith.mulf %252, %254 : vector<2x32xf32>
    %258 = arith.addf %256, %257 : vector<2x32xf32>
    %259 = math.tanh %258 : vector<2x32xf32>
    %260 = arith.mulf %255, %259 : vector<2x32xf32>
    %261 = tpu.concatenate %260, %242 in 1 : vector<2x32xf32>, vector<2x32xf32> -> vector<2x64xf32>
    %cst_62 = arith.constant dense<0.000000e+00> : vector<2x128xf32>
    %262 = tpu.matmul %261, %159, %cst_62 {dimension_numbers = #tpu.dot_dimension_numbers<[1], [0], [0], [1], [0, 0, 1, 1], [], []>} : vector<2x64xf32>, vector<64x128xf32>, vector<2x128xf32> -> vector<2x128xf32>
    %263 = arith.addf %262, %162 : vector<2x128xf32>
    %264 = arith.negf %263 : vector<2x128xf32>
    %265 = math.exp %264 : vector<2x128xf32>
    %cst_63 = arith.constant 1.000000e+00 : f32
    %266 = vector.broadcast %cst_63 : f32 to vector<2x128xf32>
    %267 = arith.addf %266, %265 : vector<2x128xf32>
    %268 = arith.divf %266, %267 : vector<2x128xf32>
    %269 = math.tanh %263 : vector<2x128xf32>
    %270 = vector.extract_strided_slice %268 {offsets = [0, 0], sizes = [2, 32], strides = [1, 1]} : vector<2x128xf32> to vector<2x32xf32>
    %271 = vector.extract_strided_slice %268 {offsets = [0, 32], sizes = [2, 32], strides = [1, 1]} : vector<2x128xf32> to vector<2x32xf32>
    %272 = vector.extract_strided_slice %269 {offsets = [0, 64], sizes = [2, 32], strides = [1, 1]} : vector<2x128xf32> to vector<2x32xf32>
    %273 = vector.extract_strided_slice %268 {offsets = [0, 96], sizes = [2, 32], strides = [1, 1]} : vector<2x128xf32> to vector<2x32xf32>
    %274 = arith.mulf %271, %240 : vector<2x32xf32>
    %275 = arith.mulf %270, %272 : vector<2x32xf32>
    %276 = arith.addf %274, %275 : vector<2x32xf32>
    %277 = math.tanh %276 : vector<2x32xf32>
    %278 = arith.mulf %273, %277 : vector<2x32xf32>
    %279 = vector.extract_strided_slice %157 {offsets = [6, 0], sizes = [2, 128], strides = [1, 1]} : vector<16x128xf32> to vector<2x128xf32>
    %cst_64 = arith.constant dense<0.000000e+00> : vector<2x128xf32>
    %280 = tpu.matmul %260, %158, %cst_64 {dimension_numbers = #tpu.dot_dimension_numbers<[1], [0], [0], [1], [0, 0, 1, 1], [], []>} : vector<2x32xf32>, vector<32x128xf32>, vector<2x128xf32> -> vector<2x128xf32>
    %281 = arith.addf %279, %280 : vector<2x128xf32>
    %282 = arith.negf %281 : vector<2x128xf32>
    %283 = math.exp %282 : vector<2x128xf32>
    %cst_65 = arith.constant 1.000000e+00 : f32
    %284 = vector.broadcast %cst_65 : f32 to vector<2x128xf32>
    %285 = arith.addf %284, %283 : vector<2x128xf32>
    %286 = arith.divf %284, %285 : vector<2x128xf32>
    %287 = math.tanh %281 : vector<2x128xf32>
    %288 = vector.extract_strided_slice %286 {offsets = [0, 0], sizes = [2, 32], strides = [1, 1]} : vector<2x128xf32> to vector<2x32xf32>
    %289 = vector.extract_strided_slice %286 {offsets = [0, 32], sizes = [2, 32], strides = [1, 1]} : vector<2x128xf32> to vector<2x32xf32>
    %290 = vector.extract_strided_slice %287 {offsets = [0, 64], sizes = [2, 32], strides = [1, 1]} : vector<2x128xf32> to vector<2x32xf32>
    %291 = vector.extract_strided_slice %286 {offsets = [0, 96], sizes = [2, 32], strides = [1, 1]} : vector<2x128xf32> to vector<2x32xf32>
    %292 = arith.mulf %289, %258 : vector<2x32xf32>
    %293 = arith.mulf %288, %290 : vector<2x32xf32>
    %294 = arith.addf %292, %293 : vector<2x32xf32>
    %295 = math.tanh %294 : vector<2x32xf32>
    %296 = arith.mulf %291, %295 : vector<2x32xf32>
    %297 = tpu.concatenate %296, %278 in 1 : vector<2x32xf32>, vector<2x32xf32> -> vector<2x64xf32>
    %cst_66 = arith.constant dense<0.000000e+00> : vector<2x128xf32>
    %298 = tpu.matmul %297, %159, %cst_66 {dimension_numbers = #tpu.dot_dimension_numbers<[1], [0], [0], [1], [0, 0, 1, 1], [], []>} : vector<2x64xf32>, vector<64x128xf32>, vector<2x128xf32> -> vector<2x128xf32>
    %299 = arith.addf %298, %162 : vector<2x128xf32>
    %300 = arith.negf %299 : vector<2x128xf32>
    %301 = math.exp %300 : vector<2x128xf32>
    %cst_67 = arith.constant 1.000000e+00 : f32
    %302 = vector.broadcast %cst_67 : f32 to vector<2x128xf32>
    %303 = arith.addf %302, %301 : vector<2x128xf32>
    %304 = arith.divf %302, %303 : vector<2x128xf32>
    %305 = math.tanh %299 : vector<2x128xf32>
    %306 = vector.extract_strided_slice %304 {offsets = [0, 0], sizes = [2, 32], strides = [1, 1]} : vector<2x128xf32> to vector<2x32xf32>
    %307 = vector.extract_strided_slice %304 {offsets = [0, 32], sizes = [2, 32], strides = [1, 1]} : vector<2x128xf32> to vector<2x32xf32>
    %308 = vector.extract_strided_slice %305 {offsets = [0, 64], sizes = [2, 32], strides = [1, 1]} : vector<2x128xf32> to vector<2x32xf32>
    %309 = vector.extract_strided_slice %304 {offsets = [0, 96], sizes = [2, 32], strides = [1, 1]} : vector<2x128xf32> to vector<2x32xf32>
    %310 = arith.mulf %307, %276 : vector<2x32xf32>
    %311 = arith.mulf %306, %308 : vector<2x32xf32>
    %312 = arith.addf %310, %311 : vector<2x32xf32>
    %313 = math.tanh %312 : vector<2x32xf32>
    %314 = arith.mulf %309, %313 : vector<2x32xf32>
    %315 = vector.extract_strided_slice %157 {offsets = [8, 0], sizes = [2, 128], strides = [1, 1]} : vector<16x128xf32> to vector<2x128xf32>
    %cst_68 = arith.constant dense<0.000000e+00> : vector<2x128xf32>
    %316 = tpu.matmul %296, %158, %cst_68 {dimension_numbers = #tpu.dot_dimension_numbers<[1], [0], [0], [1], [0, 0, 1, 1], [], []>} : vector<2x32xf32>, vector<32x128xf32>, vector<2x128xf32> -> vector<2x128xf32>
    %317 = arith.addf %315, %316 : vector<2x128xf32>
    %318 = arith.negf %317 : vector<2x128xf32>
    %319 = math.exp %318 : vector<2x128xf32>
    %cst_69 = arith.constant 1.000000e+00 : f32
    %320 = vector.broadcast %cst_69 : f32 to vector<2x128xf32>
    %321 = arith.addf %320, %319 : vector<2x128xf32>
    %322 = arith.divf %320, %321 : vector<2x128xf32>
    %323 = math.tanh %317 : vector<2x128xf32>
    %324 = vector.extract_strided_slice %322 {offsets = [0, 0], sizes = [2, 32], strides = [1, 1]} : vector<2x128xf32> to vector<2x32xf32>
    %325 = vector.extract_strided_slice %322 {offsets = [0, 32], sizes = [2, 32], strides = [1, 1]} : vector<2x128xf32> to vector<2x32xf32>
    %326 = vector.extract_strided_slice %323 {offsets = [0, 64], sizes = [2, 32], strides = [1, 1]} : vector<2x128xf32> to vector<2x32xf32>
    %327 = vector.extract_strided_slice %322 {offsets = [0, 96], sizes = [2, 32], strides = [1, 1]} : vector<2x128xf32> to vector<2x32xf32>
    %328 = arith.mulf %325, %294 : vector<2x32xf32>
    %329 = arith.mulf %324, %326 : vector<2x32xf32>
    %330 = arith.addf %328, %329 : vector<2x32xf32>
    %331 = math.tanh %330 : vector<2x32xf32>
    %332 = arith.mulf %327, %331 : vector<2x32xf32>
    %333 = tpu.concatenate %332, %314 in 1 : vector<2x32xf32>, vector<2x32xf32> -> vector<2x64xf32>
    %cst_70 = arith.constant dense<0.000000e+00> : vector<2x128xf32>
    %334 = tpu.matmul %333, %159, %cst_70 {dimension_numbers = #tpu.dot_dimension_numbers<[1], [0], [0], [1], [0, 0, 1, 1], [], []>} : vector<2x64xf32>, vector<64x128xf32>, vector<2x128xf32> -> vector<2x128xf32>
    %335 = arith.addf %334, %162 : vector<2x128xf32>
    %336 = arith.negf %335 : vector<2x128xf32>
    %337 = math.exp %336 : vector<2x128xf32>
    %cst_71 = arith.constant 1.000000e+00 : f32
    %338 = vector.broadcast %cst_71 : f32 to vector<2x128xf32>
    %339 = arith.addf %338, %337 : vector<2x128xf32>
    %340 = arith.divf %338, %339 : vector<2x128xf32>
    %341 = math.tanh %335 : vector<2x128xf32>
    %342 = vector.extract_strided_slice %340 {offsets = [0, 0], sizes = [2, 32], strides = [1, 1]} : vector<2x128xf32> to vector<2x32xf32>
    %343 = vector.extract_strided_slice %340 {offsets = [0, 32], sizes = [2, 32], strides = [1, 1]} : vector<2x128xf32> to vector<2x32xf32>
    %344 = vector.extract_strided_slice %341 {offsets = [0, 64], sizes = [2, 32], strides = [1, 1]} : vector<2x128xf32> to vector<2x32xf32>
    %345 = vector.extract_strided_slice %340 {offsets = [0, 96], sizes = [2, 32], strides = [1, 1]} : vector<2x128xf32> to vector<2x32xf32>
    %346 = arith.mulf %343, %312 : vector<2x32xf32>
    %347 = arith.mulf %342, %344 : vector<2x32xf32>
    %348 = arith.addf %346, %347 : vector<2x32xf32>
    %349 = math.tanh %348 : vector<2x32xf32>
    %350 = arith.mulf %345, %349 : vector<2x32xf32>
    %351 = vector.extract_strided_slice %157 {offsets = [10, 0], sizes = [2, 128], strides = [1, 1]} : vector<16x128xf32> to vector<2x128xf32>
    %cst_72 = arith.constant dense<0.000000e+00> : vector<2x128xf32>
    %352 = tpu.matmul %332, %158, %cst_72 {dimension_numbers = #tpu.dot_dimension_numbers<[1], [0], [0], [1], [0, 0, 1, 1], [], []>} : vector<2x32xf32>, vector<32x128xf32>, vector<2x128xf32> -> vector<2x128xf32>
    %353 = arith.addf %351, %352 : vector<2x128xf32>
    %354 = arith.negf %353 : vector<2x128xf32>
    %355 = math.exp %354 : vector<2x128xf32>
    %cst_73 = arith.constant 1.000000e+00 : f32
    %356 = vector.broadcast %cst_73 : f32 to vector<2x128xf32>
    %357 = arith.addf %356, %355 : vector<2x128xf32>
    %358 = arith.divf %356, %357 : vector<2x128xf32>
    %359 = math.tanh %353 : vector<2x128xf32>
    %360 = vector.extract_strided_slice %358 {offsets = [0, 0], sizes = [2, 32], strides = [1, 1]} : vector<2x128xf32> to vector<2x32xf32>
    %361 = vector.extract_strided_slice %358 {offsets = [0, 32], sizes = [2, 32], strides = [1, 1]} : vector<2x128xf32> to vector<2x32xf32>
    %362 = vector.extract_strided_slice %359 {offsets = [0, 64], sizes = [2, 32], strides = [1, 1]} : vector<2x128xf32> to vector<2x32xf32>
    %363 = vector.extract_strided_slice %358 {offsets = [0, 96], sizes = [2, 32], strides = [1, 1]} : vector<2x128xf32> to vector<2x32xf32>
    %364 = arith.mulf %361, %330 : vector<2x32xf32>
    %365 = arith.mulf %360, %362 : vector<2x32xf32>
    %366 = arith.addf %364, %365 : vector<2x32xf32>
    %367 = math.tanh %366 : vector<2x32xf32>
    %368 = arith.mulf %363, %367 : vector<2x32xf32>
    %369 = tpu.concatenate %368, %350 in 1 : vector<2x32xf32>, vector<2x32xf32> -> vector<2x64xf32>
    %cst_74 = arith.constant dense<0.000000e+00> : vector<2x128xf32>
    %370 = tpu.matmul %369, %159, %cst_74 {dimension_numbers = #tpu.dot_dimension_numbers<[1], [0], [0], [1], [0, 0, 1, 1], [], []>} : vector<2x64xf32>, vector<64x128xf32>, vector<2x128xf32> -> vector<2x128xf32>
    %371 = arith.addf %370, %162 : vector<2x128xf32>
    %372 = arith.negf %371 : vector<2x128xf32>
    %373 = math.exp %372 : vector<2x128xf32>
    %cst_75 = arith.constant 1.000000e+00 : f32
    %374 = vector.broadcast %cst_75 : f32 to vector<2x128xf32>
    %375 = arith.addf %374, %373 : vector<2x128xf32>
    %376 = arith.divf %374, %375 : vector<2x128xf32>
    %377 = math.tanh %371 : vector<2x128xf32>
    %378 = vector.extract_strided_slice %376 {offsets = [0, 0], sizes = [2, 32], strides = [1, 1]} : vector<2x128xf32> to vector<2x32xf32>
    %379 = vector.extract_strided_slice %376 {offsets = [0, 32], sizes = [2, 32], strides = [1, 1]} : vector<2x128xf32> to vector<2x32xf32>
    %380 = vector.extract_strided_slice %377 {offsets = [0, 64], sizes = [2, 32], strides = [1, 1]} : vector<2x128xf32> to vector<2x32xf32>
    %381 = vector.extract_strided_slice %376 {offsets = [0, 96], sizes = [2, 32], strides = [1, 1]} : vector<2x128xf32> to vector<2x32xf32>
    %382 = arith.mulf %379, %348 : vector<2x32xf32>
    %383 = arith.mulf %378, %380 : vector<2x32xf32>
    %384 = arith.addf %382, %383 : vector<2x32xf32>
    %385 = math.tanh %384 : vector<2x32xf32>
    %386 = arith.mulf %381, %385 : vector<2x32xf32>
    %387 = vector.extract_strided_slice %157 {offsets = [12, 0], sizes = [2, 128], strides = [1, 1]} : vector<16x128xf32> to vector<2x128xf32>
    %cst_76 = arith.constant dense<0.000000e+00> : vector<2x128xf32>
    %388 = tpu.matmul %368, %158, %cst_76 {dimension_numbers = #tpu.dot_dimension_numbers<[1], [0], [0], [1], [0, 0, 1, 1], [], []>} : vector<2x32xf32>, vector<32x128xf32>, vector<2x128xf32> -> vector<2x128xf32>
    %389 = arith.addf %387, %388 : vector<2x128xf32>
    %390 = arith.negf %389 : vector<2x128xf32>
    %391 = math.exp %390 : vector<2x128xf32>
    %cst_77 = arith.constant 1.000000e+00 : f32
    %392 = vector.broadcast %cst_77 : f32 to vector<2x128xf32>
    %393 = arith.addf %392, %391 : vector<2x128xf32>
    %394 = arith.divf %392, %393 : vector<2x128xf32>
    %395 = math.tanh %389 : vector<2x128xf32>
    %396 = vector.extract_strided_slice %394 {offsets = [0, 0], sizes = [2, 32], strides = [1, 1]} : vector<2x128xf32> to vector<2x32xf32>
    %397 = vector.extract_strided_slice %394 {offsets = [0, 32], sizes = [2, 32], strides = [1, 1]} : vector<2x128xf32> to vector<2x32xf32>
    %398 = vector.extract_strided_slice %395 {offsets = [0, 64], sizes = [2, 32], strides = [1, 1]} : vector<2x128xf32> to vector<2x32xf32>
    %399 = vector.extract_strided_slice %394 {offsets = [0, 96], sizes = [2, 32], strides = [1, 1]} : vector<2x128xf32> to vector<2x32xf32>
    %400 = arith.mulf %397, %366 : vector<2x32xf32>
    %401 = arith.mulf %396, %398 : vector<2x32xf32>
    %402 = arith.addf %400, %401 : vector<2x32xf32>
    %403 = math.tanh %402 : vector<2x32xf32>
    %404 = arith.mulf %399, %403 : vector<2x32xf32>
    %405 = tpu.concatenate %404, %386 in 1 : vector<2x32xf32>, vector<2x32xf32> -> vector<2x64xf32>
    %cst_78 = arith.constant dense<0.000000e+00> : vector<2x128xf32>
    %406 = tpu.matmul %405, %159, %cst_78 {dimension_numbers = #tpu.dot_dimension_numbers<[1], [0], [0], [1], [0, 0, 1, 1], [], []>} : vector<2x64xf32>, vector<64x128xf32>, vector<2x128xf32> -> vector<2x128xf32>
    %407 = arith.addf %406, %162 : vector<2x128xf32>
    %408 = arith.negf %407 : vector<2x128xf32>
    %409 = math.exp %408 : vector<2x128xf32>
    %cst_79 = arith.constant 1.000000e+00 : f32
    %410 = vector.broadcast %cst_79 : f32 to vector<2x128xf32>
    %411 = arith.addf %410, %409 : vector<2x128xf32>
    %412 = arith.divf %410, %411 : vector<2x128xf32>
    %413 = math.tanh %407 : vector<2x128xf32>
    %414 = vector.extract_strided_slice %412 {offsets = [0, 0], sizes = [2, 32], strides = [1, 1]} : vector<2x128xf32> to vector<2x32xf32>
    %415 = vector.extract_strided_slice %412 {offsets = [0, 32], sizes = [2, 32], strides = [1, 1]} : vector<2x128xf32> to vector<2x32xf32>
    %416 = vector.extract_strided_slice %413 {offsets = [0, 64], sizes = [2, 32], strides = [1, 1]} : vector<2x128xf32> to vector<2x32xf32>
    %417 = vector.extract_strided_slice %412 {offsets = [0, 96], sizes = [2, 32], strides = [1, 1]} : vector<2x128xf32> to vector<2x32xf32>
    %418 = arith.mulf %415, %384 : vector<2x32xf32>
    %419 = arith.mulf %414, %416 : vector<2x32xf32>
    %420 = arith.addf %418, %419 : vector<2x32xf32>
    %421 = math.tanh %420 : vector<2x32xf32>
    %422 = arith.mulf %417, %421 : vector<2x32xf32>
    %423 = vector.extract_strided_slice %157 {offsets = [14, 0], sizes = [2, 128], strides = [1, 1]} : vector<16x128xf32> to vector<2x128xf32>
    %cst_80 = arith.constant dense<0.000000e+00> : vector<2x128xf32>
    %424 = tpu.matmul %404, %158, %cst_80 {dimension_numbers = #tpu.dot_dimension_numbers<[1], [0], [0], [1], [0, 0, 1, 1], [], []>} : vector<2x32xf32>, vector<32x128xf32>, vector<2x128xf32> -> vector<2x128xf32>
    %425 = arith.addf %423, %424 : vector<2x128xf32>
    %426 = arith.negf %425 : vector<2x128xf32>
    %427 = math.exp %426 : vector<2x128xf32>
    %cst_81 = arith.constant 1.000000e+00 : f32
    %428 = vector.broadcast %cst_81 : f32 to vector<2x128xf32>
    %429 = arith.addf %428, %427 : vector<2x128xf32>
    %430 = arith.divf %428, %429 : vector<2x128xf32>
    %431 = math.tanh %425 : vector<2x128xf32>
    %432 = vector.extract_strided_slice %430 {offsets = [0, 0], sizes = [2, 32], strides = [1, 1]} : vector<2x128xf32> to vector<2x32xf32>
    %433 = vector.extract_strided_slice %430 {offsets = [0, 32], sizes = [2, 32], strides = [1, 1]} : vector<2x128xf32> to vector<2x32xf32>
    %434 = vector.extract_strided_slice %431 {offsets = [0, 64], sizes = [2, 32], strides = [1, 1]} : vector<2x128xf32> to vector<2x32xf32>
    %435 = vector.extract_strided_slice %430 {offsets = [0, 96], sizes = [2, 32], strides = [1, 1]} : vector<2x128xf32> to vector<2x32xf32>
    %436 = arith.mulf %433, %402 : vector<2x32xf32>
    %437 = arith.mulf %432, %434 : vector<2x32xf32>
    %438 = arith.addf %436, %437 : vector<2x32xf32>
    %439 = math.tanh %438 : vector<2x32xf32>
    %440 = arith.mulf %435, %439 : vector<2x32xf32>
    %441 = tpu.concatenate %440, %422 in 1 : vector<2x32xf32>, vector<2x32xf32> -> vector<2x64xf32>
    %cst_82 = arith.constant dense<0.000000e+00> : vector<2x128xf32>
    %442 = tpu.matmul %441, %159, %cst_82 {dimension_numbers = #tpu.dot_dimension_numbers<[1], [0], [0], [1], [0, 0, 1, 1], [], []>} : vector<2x64xf32>, vector<64x128xf32>, vector<2x128xf32> -> vector<2x128xf32>
    %443 = arith.addf %442, %162 : vector<2x128xf32>
    %444 = arith.negf %443 : vector<2x128xf32>
    %445 = math.exp %444 : vector<2x128xf32>
    %cst_83 = arith.constant 1.000000e+00 : f32
    %446 = vector.broadcast %cst_83 : f32 to vector<2x128xf32>
    %447 = arith.addf %446, %445 : vector<2x128xf32>
    %448 = arith.divf %446, %447 : vector<2x128xf32>
    %449 = math.tanh %443 : vector<2x128xf32>
    %450 = vector.extract_strided_slice %448 {offsets = [0, 0], sizes = [2, 32], strides = [1, 1]} : vector<2x128xf32> to vector<2x32xf32>
    %451 = vector.extract_strided_slice %448 {offsets = [0, 32], sizes = [2, 32], strides = [1, 1]} : vector<2x128xf32> to vector<2x32xf32>
    %452 = vector.extract_strided_slice %449 {offsets = [0, 64], sizes = [2, 32], strides = [1, 1]} : vector<2x128xf32> to vector<2x32xf32>
    %453 = vector.extract_strided_slice %448 {offsets = [0, 96], sizes = [2, 32], strides = [1, 1]} : vector<2x128xf32> to vector<2x32xf32>
    %454 = arith.mulf %451, %420 : vector<2x32xf32>
    %455 = arith.mulf %450, %452 : vector<2x32xf32>
    %456 = arith.addf %454, %455 : vector<2x32xf32>
    %457 = math.tanh %456 : vector<2x32xf32>
    %458 = arith.mulf %453, %457 : vector<2x32xf32>
    %459 = vector.extract_strided_slice %206 {offsets = [0, 0], sizes = [1, 32], strides = [1, 1]} : vector<2x32xf32> to vector<1x32xf32>
    %460 = vector.extract_strided_slice %242 {offsets = [0, 0], sizes = [1, 32], strides = [1, 1]} : vector<2x32xf32> to vector<1x32xf32>
    %461 = vector.extract_strided_slice %278 {offsets = [0, 0], sizes = [1, 32], strides = [1, 1]} : vector<2x32xf32> to vector<1x32xf32>
    %462 = vector.extract_strided_slice %314 {offsets = [0, 0], sizes = [1, 32], strides = [1, 1]} : vector<2x32xf32> to vector<1x32xf32>
    %463 = vector.extract_strided_slice %350 {offsets = [0, 0], sizes = [1, 32], strides = [1, 1]} : vector<2x32xf32> to vector<1x32xf32>
    %464 = vector.extract_strided_slice %386 {offsets = [0, 0], sizes = [1, 32], strides = [1, 1]} : vector<2x32xf32> to vector<1x32xf32>
    %465 = vector.extract_strided_slice %422 {offsets = [0, 0], sizes = [1, 32], strides = [1, 1]} : vector<2x32xf32> to vector<1x32xf32>
    %466 = vector.extract_strided_slice %458 {offsets = [0, 0], sizes = [1, 32], strides = [1, 1]} : vector<2x32xf32> to vector<1x32xf32>
    %467 = tpu.concatenate %459, %460, %461, %462, %463, %464, %465, %466 in 0 : vector<1x32xf32>, vector<1x32xf32>, vector<1x32xf32>, vector<1x32xf32>, vector<1x32xf32>, vector<1x32xf32>, vector<1x32xf32>, vector<1x32xf32> -> vector<8x32xf32>
    %468 = vector.extract_strided_slice %206 {offsets = [1, 0], sizes = [1, 32], strides = [1, 1]} : vector<2x32xf32> to vector<1x32xf32>
    %469 = vector.extract_strided_slice %242 {offsets = [1, 0], sizes = [1, 32], strides = [1, 1]} : vector<2x32xf32> to vector<1x32xf32>
    %470 = vector.extract_strided_slice %278 {offsets = [1, 0], sizes = [1, 32], strides = [1, 1]} : vector<2x32xf32> to vector<1x32xf32>
    %471 = vector.extract_strided_slice %314 {offsets = [1, 0], sizes = [1, 32], strides = [1, 1]} : vector<2x32xf32> to vector<1x32xf32>
    %472 = vector.extract_strided_slice %350 {offsets = [1, 0], sizes = [1, 32], strides = [1, 1]} : vector<2x32xf32> to vector<1x32xf32>
    %473 = vector.extract_strided_slice %386 {offsets = [1, 0], sizes = [1, 32], strides = [1, 1]} : vector<2x32xf32> to vector<1x32xf32>
    %474 = vector.extract_strided_slice %422 {offsets = [1, 0], sizes = [1, 32], strides = [1, 1]} : vector<2x32xf32> to vector<1x32xf32>
    %475 = vector.extract_strided_slice %458 {offsets = [1, 0], sizes = [1, 32], strides = [1, 1]} : vector<2x32xf32> to vector<1x32xf32>
    %476 = tpu.concatenate %468, %469, %470, %471, %472, %473, %474, %475 in 0 : vector<1x32xf32>, vector<1x32xf32>, vector<1x32xf32>, vector<1x32xf32>, vector<1x32xf32>, vector<1x32xf32>, vector<1x32xf32>, vector<1x32xf32> -> vector<8x32xf32>
    %477 = tpu.concatenate %467, %476 in 0 : vector<8x32xf32>, vector<8x32xf32> -> vector<16x32xf32>
    %c0_84 = arith.constant 0 : index
    %c0_85 = arith.constant 0 : index
    %478 = vector.load %arg12[%c0_84, %c0_85] : memref<32x30xf32, #tpu.memory_space<vmem>>, vector<32x30xf32>
    %cst_86 = arith.constant dense<0.000000e+00> : vector<16x30xf32>
    %479 = tpu.matmul %477, %478, %cst_86 {dimension_numbers = #tpu.dot_dimension_numbers<[1], [0], [0], [1], [0, 0, 1, 1], [], []>} : vector<16x32xf32>, vector<32x30xf32>, vector<16x30xf32> -> vector<16x30xf32>
    %c0_87 = arith.constant 0 : index
    %c0_88 = arith.constant 0 : index
    %480 = vector.load %arg13[%c0_87, %c0_88] : memref<1x30xf32, #tpu.memory_space<vmem>>, vector<1x30xf32>
    %481 = vector.broadcast %480 : vector<1x30xf32> to vector<16x30xf32>
    %482 = arith.addf %479, %481 : vector<16x30xf32>
    %c0_89 = arith.constant 0 : index
    %c0_90 = arith.constant 0 : index
    %483 = vector.load %arg16[%c0_89, %c0_90] : memref<16x30xf32, #tpu.memory_space<vmem>>, vector<16x30xf32>
    tpu.vector_store %arg16[%c0_89, %c0_90], %482 {strides = array<i32>} : memref<16x30xf32, #tpu.memory_space<vmem>>, vector<16x30xf32>,
    %c0_91 = arith.constant 0 : index
    %c0_92 = arith.constant 0 : index
    %c0_93 = arith.constant 0 : index
    %484 = vector.load %arg17[%c0_91, %c0_92, %c0_93] : memref<2x2x32xf32, #tpu.memory_space<vmem>>, vector<1x2x32xf32>
    %485 = vector.shape_cast %484 : vector<1x2x32xf32> to vector<2x32xf32>
    %486 = vector.shape_cast %440 : vector<2x32xf32> to vector<1x2x32xf32>
    tpu.vector_store %arg17[%c0_91, %c0_92, %c0_93], %486 {strides = array<i32>} : memref<2x2x32xf32, #tpu.memory_space<vmem>>, vector<1x2x32xf32>,
    %c1_94 = arith.constant 1 : index
    %c0_95 = arith.constant 0 : index
    %c0_96 = arith.constant 0 : index
    %487 = vector.load %arg17[%c1_94, %c0_95, %c0_96] : memref<2x2x32xf32, #tpu.memory_space<vmem>>, vector<1x2x32xf32>
    %488 = vector.shape_cast %487 : vector<1x2x32xf32> to vector<2x32xf32>
    %489 = vector.shape_cast %458 : vector<2x32xf32> to vector<1x2x32xf32>
    tpu.vector_store %arg17[%c1_94, %c0_95, %c0_96], %489 {strides = array<i32>} : memref<2x2x32xf32, #tpu.memory_space<vmem>>, vector<1x2x32xf32>,
    %c0_97 = arith.constant 0 : index
    %c0_98 = arith.constant 0 : index
    %c0_99 = arith.constant 0 : index
    %490 = vector.load %arg18[%c0_97, %c0_98, %c0_99] : memref<2x2x32xf32, #tpu.memory_space<vmem>>, vector<1x2x32xf32>
    %491 = vector.shape_cast %490 : vector<1x2x32xf32> to vector<2x32xf32>
    %492 = vector.shape_cast %438 : vector<2x32xf32> to vector<1x2x32xf32>
    tpu.vector_store %arg18[%c0_97, %c0_98, %c0_99], %492 {strides = array<i32>} : memref<2x2x32xf32, #tpu.memory_space<vmem>>, vector<1x2x32xf32>,
    %c1_100 = arith.constant 1 : index
    %c0_101 = arith.constant 0 : index
    %c0_102 = arith.constant 0 : index
    %493 = vector.load %arg18[%c1_100, %c0_101, %c0_102] : memref<2x2x32xf32, #tpu.memory_space<vmem>>, vector<1x2x32xf32>
    %494 = vector.shape_cast %493 : vector<1x2x32xf32> to vector<2x32xf32>
    %495 = vector.shape_cast %456 : vector<2x32xf32> to vector<1x2x32xf32>
    tpu.vector_store %arg18[%c1_100, %c0_101, %c0_102], %495 {strides = array<i32>} : memref<2x2x32xf32, #tpu.memory_space<vmem>>, vector<1x2x32xf32>,
    return
  }
}

</mosaic_0001>

<llo_original>
// kernel: char_aware_lm_forward.1
$region0: #{char_aware_lm_forward.1}
  #allocation0 [shape = 'u32[]', space=smem, size = 0x4, offset = 0x4, fixed_abs, tag = 'smem constant byte address 0x4 - core index']
  #allocation1 [shape = 'u32[72,128]{1,0:T(1,128)}', space=vmem, size = 0x9000, scoped, tag = 'internal scratch']
  %s0 = inlined_call_operand.vmem [shape: s32[16,10], index: 0, kind: input, shape index: {}]
  %s1 = inlined_call_operand.vmem [shape: f32[20,8], index: 1, kind: input, shape index: {}]
  %s2 = inlined_call_operand.vmem [shape: f32[24,24], index: 2, kind: input, shape index: {}]
  %s3 = inlined_call_operand.vmem [shape: f32[1,24], index: 3, kind: input, shape index: {}]
  %s4 = inlined_call_operand.vmem [shape: f32[10,24], index: 4, kind: input, shape index: {}]
  %s5 = inlined_call_operand.vmem [shape: f32[24,48], index: 5, kind: input, shape index: {}]
  %s6 = inlined_call_operand.vmem [shape: f32[1,48], index: 6, kind: input, shape index: {}]
  %s7 = inlined_call_operand.vmem [shape: f32[24,128], index: 7, kind: input, shape index: {}]
  %s8 = inlined_call_operand.vmem [shape: f32[32,128], index: 8, kind: input, shape index: {}]
  %s9 = inlined_call_operand.vmem [shape: f32[1,128], index: 9, kind: input, shape index: {}]
  %s10 = inlined_call_operand.vmem [shape: f32[64,128], index: 10, kind: input, shape index: {}]
  %s11 = inlined_call_operand.vmem [shape: f32[1,128], index: 11, kind: input, shape index: {}]
  %s12 = inlined_call_operand.vmem [shape: f32[32,30], index: 12, kind: input, shape index: {}]
  %s13 = inlined_call_operand.vmem [shape: f32[1,30], index: 13, kind: input, shape index: {}]
  %s14 = inlined_call_operand.vmem [shape: f32[2,2,32], index: 14, kind: input, shape index: {}]
  %s15 = inlined_call_operand.vmem [shape: f32[2,2,32], index: 15, kind: input, shape index: {}]
  %s16 = inlined_call_operand.hbm [shape: f32[16,30], index: 16, kind: output, shape index: {0}]
  %s17 = inlined_call_operand.hbm [shape: f32[2,2,32], index: 17, kind: output, shape index: {1}]
  %s18 = inlined_call_operand.hbm [shape: f32[2,2,32], index: 18, kind: output, shape index: {2}]
  %19 = xla_tuple %s16, %s17, %s18
  %s20 = sld [smem:[#allocation0]]
  $region90: #{char_aware_lm_forward.1} parent=0
    _
  %s22 = ssub.s32 1, %s20
  %s23 = scalar_select 0, %s22, %s20
  $region1: #{char_aware_lm_forward.1} parent=0
    #allocation2 [shape = 'u8[8192]{0}', space=vmem, size = 0x2000, scoped, tag = 'output window, operand 0, single buffered']
    #allocation3 [shape = 's32[1]{0}', space=sflag, size = 0x4, scoped, tag = 'scoped memory for char_aware_lm_forward.1']
    #allocation4 [shape = 'u8[2048]{0}', space=vmem, size = 0x800, scoped, tag = 'output window, operand 1, single buffered']
    #allocation5 [shape = 's32[1]{0}', space=sflag, size = 0x4, scoped, tag = 'scoped memory for char_aware_lm_forward.1']
    #allocation6 [shape = 'u8[2048]{0}', space=vmem, size = 0x800, scoped, tag = 'output window, operand 2, single buffered']
    %24 = vsyncpa [#allocation3], 0
    %25 = vsyncpa [#allocation5], 0
    // Predicated region
    $region2: #{char_aware_lm_forward.1} parent=1 // pred_check
      _
    $region3: #{char_aware_lm_forward.1} parent=1 // pred_check_branch
      %27 = sbr.rel (0) target = $region5
    $region4: #{char_aware_lm_forward.1} parent=1 // pred_region
      _
    $region5: #{char_aware_lm_forward.1} parent=1 // pred_fallthru
      _
    // Predicated region
    $region6: #{char_aware_lm_forward.1} parent=1 // pred_check
      _
    $region7: #{char_aware_lm_forward.1} parent=1 // pred_check_branch
      %29 = sbr.rel (0) target = $region9
    $region8: #{char_aware_lm_forward.1} parent=1 // pred_region
      _
    $region9: #{char_aware_lm_forward.1} parent=1 // pred_fallthru
      _
    // Predicated region
    $region10: #{char_aware_lm_forward.1} parent=1 // pred_check
      _
    $region11: #{char_aware_lm_forward.1} parent=1 // pred_check_branch
      %31 = sbr.rel (0) target = $region13
    $region12: #{char_aware_lm_forward.1} parent=1 // pred_region
      _
    $region13: #{char_aware_lm_forward.1} parent=1 // pred_fallthru
      _
    // Predicated region
    $region14: #{char_aware_lm_forward.1} parent=1 // pred_check
      _
    $region15: #{char_aware_lm_forward.1} parent=1 // pred_check_branch
      %33 = sbr.rel (0) target = $region17
    $region16: #{char_aware_lm_forward.1} parent=1 // pred_region
      _
    $region17: #{char_aware_lm_forward.1} parent=1 // pred_fallthru
      _
    // Predicated region
    $region18: #{char_aware_lm_forward.1} parent=1 // pred_check
      _
    $region19: #{char_aware_lm_forward.1} parent=1 // pred_check_branch
      %35 = sbr.rel (0) target = $region21
    $region20: #{char_aware_lm_forward.1} parent=1 // pred_region
      _
    $region21: #{char_aware_lm_forward.1} parent=1 // pred_fallthru
      _
    // Predicated region
    $region22: #{char_aware_lm_forward.1} parent=1 // pred_check
      _
    $region23: #{char_aware_lm_forward.1} parent=1 // pred_check_branch
      %37 = sbr.rel (0) target = $region25
    $region24: #{char_aware_lm_forward.1} parent=1 // pred_region
      _
    $region25: #{char_aware_lm_forward.1} parent=1 // pred_fallthru
      _
    // Predicated region
    $region26: #{char_aware_lm_forward.1} parent=1 // pred_check
      _
    $region27: #{char_aware_lm_forward.1} parent=1 // pred_check_branch
      %39 = sbr.rel (0) target = $region29
    $region28: #{char_aware_lm_forward.1} parent=1 // pred_region
      _
    $region29: #{char_aware_lm_forward.1} parent=1 // pred_fallthru
      _
    // Predicated region
    $region30: #{char_aware_lm_forward.1} parent=1 // pred_check
      _
    $region31: #{char_aware_lm_forward.1} parent=1 // pred_check_branch
      %41 = sbr.rel (0) target = $region33
    $region32: #{char_aware_lm_forward.1} parent=1 // pred_region
      _
    $region33: #{char_aware_lm_forward.1} parent=1 // pred_fallthru
      _
    // Predicated region
    $region34: #{char_aware_lm_forward.1} parent=1 // pred_check
      _
    $region35: #{char_aware_lm_forward.1} parent=1 // pred_check_branch
      %43 = sbr.rel (0) target = $region37
    $region36: #{char_aware_lm_forward.1} parent=1 // pred_region
      _
    $region37: #{char_aware_lm_forward.1} parent=1 // pred_fallthru
      _
    // Predicated region
    $region38: #{char_aware_lm_forward.1} parent=1 // pred_check
      _
    $region39: #{char_aware_lm_forward.1} parent=1 // pred_check_branch
      %45 = sbr.rel (0) target = $region41
    $region40: #{char_aware_lm_forward.1} parent=1 // pred_region
      _
    $region41: #{char_aware_lm_forward.1} parent=1 // pred_fallthru
      _
    // Predicated region
    $region42: #{char_aware_lm_forward.1} parent=1 // pred_check
      _
    $region43: #{char_aware_lm_forward.1} parent=1 // pred_check_branch
      %47 = sbr.rel (0) target = $region45
    $region44: #{char_aware_lm_forward.1} parent=1 // pred_region
      _
    $region45: #{char_aware_lm_forward.1} parent=1 // pred_fallthru
      _
    // Predicated region
    $region46: #{char_aware_lm_forward.1} parent=1 // pred_check
      _
    $region47: #{char_aware_lm_forward.1} parent=1 // pred_check_branch
      %49 = sbr.rel (0) target = $region49
    $region48: #{char_aware_lm_forward.1} parent=1 // pred_region
      _
    $region49: #{char_aware_lm_forward.1} parent=1 // pred_fallthru
      _
    // Predicated region
    $region50: #{char_aware_lm_forward.1} parent=1 // pred_check
      _
    $region51: #{char_aware_lm_forward.1} parent=1 // pred_check_branch
      %51 = sbr.rel (0) target = $region53
    $region52: #{char_aware_lm_forward.1} parent=1 // pred_region
      _
    $region53: #{char_aware_lm_forward.1} parent=1 // pred_fallthru
      _
    // Predicated region
    $region54: #{char_aware_lm_forward.1} parent=1 // pred_check
      _
    $region55: #{char_aware_lm_forward.1} parent=1 // pred_check_branch
      %53 = sbr.rel (0) target = $region57
    $region56: #{char_aware_lm_forward.1} parent=1 // pred_region
      _
    $region57: #{char_aware_lm_forward.1} parent=1 // pred_fallthru
      _
    // Predicated region
    $region58: #{char_aware_lm_forward.1} parent=1 // pred_check
      _
    $region59: #{char_aware_lm_forward.1} parent=1 // pred_check_branch
      %55 = sbr.rel (0) target = $region61
    $region60: #{char_aware_lm_forward.1} parent=1 // pred_region
      _
    $region61: #{char_aware_lm_forward.1} parent=1 // pred_fallthru
      _
    // Predicated region
    $region62: #{char_aware_lm_forward.1} parent=1 // pred_check
      _
    $region63: #{char_aware_lm_forward.1} parent=1 // pred_check_branch
      %57 = sbr.rel (0) target = $region65
    $region64: #{char_aware_lm_forward.1} parent=1 // pred_region
      _
    $region65: #{char_aware_lm_forward.1} parent=1 // pred_fallthru
      _
    %v58 = vld [vmem:[%s0] sm:$0xff]
    %v59 = vld [vmem:[%s0 + $0x8] sm:$0xff]
    %v60 = vld [vmem:[%s1] sm:$0xff]
    %v61 = vld [vmem:[%s1 + $0x8] sm:$0xff]
    %v62 = vld [vmem:[%s1 + $0x10] sm:$0xf]
    %v63 = vlaneseq
    %v64 = vand.u32 %v63, 127
    %65 = vset.pattern.permute.xlu0 0
    %66 = vperm.xlu0 %65, %v58
    %v67 = vpop.permute.xlu0 %66
    %68 = vset.pattern.permute.xlu0 0
    %69 = vperm.xlu0 %68, %v59
    %v70 = vpop.permute.xlu0 %69
    %vm71 = vcmp.eq.s32.totalorder %v64, %v67
    %vm72 = vcmp.eq.s32.totalorder %v64, %v70
    %v73 = vsel %vm71, 1, 0
    %v74 = vsel %vm72, 1, 0
    %v75 = vcvt.s32.f32 %v73
    %v76 = vcvt.s32.f32 %v74
    %77 = vset.pattern.permute.xlu0 1
    %78 = vperm.xlu0 %77, %v58
    %v79 = vpop.permute.xlu0 %78
    %80 = vset.pattern.permute.xlu0 1
    %81 = vperm.xlu0 %80, %v59
    %v82 = vpop.permute.xlu0 %81
    %vm83 = vcmp.eq.s32.totalorder %v64, %v79
    %vm84 = vcmp.eq.s32.totalorder %v64, %v82
    %v85 = vsel %vm83, 1, 0
    %v86 = vsel %vm84, 1, 0
    %v87 = vcvt.s32.f32 %v85
    %v88 = vcvt.s32.f32 %v86
    %89 = vset.pattern.permute.xlu0 2
    %90 = vperm.xlu0 %89, %v58
    %v91 = vpop.permute.xlu0 %90
    %92 = vset.pattern.permute.xlu0 2
    %93 = vperm.xlu0 %92, %v59
    %v94 = vpop.permute.xlu0 %93
    %vm95 = vcmp.eq.s32.totalorder %v64, %v91
    %vm96 = vcmp.eq.s32.totalorder %v64, %v94
    %v97 = vsel %vm95, 1, 0
    %v98 = vsel %vm96, 1, 0
    %v99 = vcvt.s32.f32 %v97
    %v100 = vcvt.s32.f32 %v98
    %101 = vset.pattern.permute.xlu0 3
    %102 = vperm.xlu0 %101, %v58
    %v103 = vpop.permute.xlu0 %102
    %104 = vset.pattern.permute.xlu0 3
    %105 = vperm.xlu0 %104, %v59
    %v106 = vpop.permute.xlu0 %105
    %vm107 = vcmp.eq.s32.totalorder %v64, %v103
    %vm108 = vcmp.eq.s32.totalorder %v64, %v106
    %v109 = vsel %vm107, 1, 0
    %v110 = vsel %vm108, 1, 0
    %v111 = vcvt.s32.f32 %v109
    %v112 = vcvt.s32.f32 %v110
    %113 = vset.pattern.permute.xlu0 4
    %114 = vperm.xlu0 %113, %v58
    %v115 = vpop.permute.xlu0 %114
    %116 = vset.pattern.permute.xlu0 4
    %117 = vperm.xlu0 %116, %v59
    %v118 = vpop.permute.xlu0 %117
    %vm119 = vcmp.eq.s32.totalorder %v64, %v115
    %vm120 = vcmp.eq.s32.totalorder %v64, %v118
    %v121 = vsel %vm119, 1, 0
    %v122 = vsel %vm120, 1, 0
    %v123 = vcvt.s32.f32 %v121
    %v124 = vcvt.s32.f32 %v122
    %125 = vset.pattern.permute.xlu0 5
    %126 = vperm.xlu0 %125, %v58
    %v127 = vpop.permute.xlu0 %126
    %128 = vset.pattern.permute.xlu0 5
    %129 = vperm.xlu0 %128, %v59
    %v130 = vpop.permute.xlu0 %129
    %vm131 = vcmp.eq.s32.totalorder %v64, %v127
    %vm132 = vcmp.eq.s32.totalorder %v64, %v130
    %v133 = vsel %vm131, 1, 0
    %v134 = vsel %vm132, 1, 0
    %v135 = vcvt.s32.f32 %v133
    %v136 = vcvt.s32.f32 %v134
    %137 = vset.pattern.permute.xlu0 6
    %138 = vperm.xlu0 %137, %v58
    %v139 = vpop.permute.xlu0 %138
    %140 = vset.pattern.permute.xlu0 6
    %141 = vperm.xlu0 %140, %v59
    %v142 = vpop.permute.xlu0 %141
    %vm143 = vcmp.eq.s32.totalorder %v64, %v139
    %vm144 = vcmp.eq.s32.totalorder %v64, %v142
    %v145 = vsel %vm143, 1, 0
    %v146 = vsel %vm144, 1, 0
    %v147 = vcvt.s32.f32 %v145
    %v148 = vcvt.s32.f32 %v146
    %149 = vset.pattern.permute.xlu0 7
    %150 = vperm.xlu0 %149, %v58
    %v151 = vpop.permute.xlu0 %150
    %152 = vset.pattern.permute.xlu0 7
    %153 = vperm.xlu0 %152, %v59
    %v154 = vpop.permute.xlu0 %153
    %vm155 = vcmp.eq.s32.totalorder %v64, %v151
    %vm156 = vcmp.eq.s32.totalorder %v64, %v154
    %v157 = vsel %vm155, 1, 0
    %v158 = vsel %vm156, 1, 0
    %v159 = vcvt.s32.f32 %v157
    %v160 = vcvt.s32.f32 %v158
    %161 = vset.pattern.permute.xlu0 8
    %162 = vperm.xlu0 %161, %v58
    %v163 = vpop.permute.xlu0 %162
    %164 = vset.pattern.permute.xlu0 8
    %165 = vperm.xlu0 %164, %v59
    %v166 = vpop.permute.xlu0 %165
    %vm167 = vcmp.eq.s32.totalorder %v64, %v163
    %vm168 = vcmp.eq.s32.totalorder %v64, %v166
    %v169 = vsel %vm167, 1, 0
    %v170 = vsel %vm168, 1, 0
    %v171 = vcvt.s32.f32 %v169
    %v172 = vcvt.s32.f32 %v170
    %173 = vset.pattern.permute.xlu0 9
    %174 = vperm.xlu0 %173, %v58
    %v175 = vpop.permute.xlu0 %174
    %176 = vset.pattern.permute.xlu0 9
    %177 = vperm.xlu0 %176, %v59
    %v178 = vpop.permute.xlu0 %177
    %vm179 = vcmp.eq.s32.totalorder %v64, %v175
    %vm180 = vcmp.eq.s32.totalorder %v64, %v178
    %v181 = vsel %vm179, 1, 0
    %v182 = vsel %vm180, 1, 0
    %v183 = vcvt.s32.f32 %v181
    %v184 = vcvt.s32.f32 %v182
    %vm185 = vcmask 162816
    %v187 = vsel %vm185, %v75, 0
    %v190 = vsel %vm185, %v76, 0
    %v193 = vsel %vm185, %v87, 0
    %v196 = vsel %vm185, %v88, 0
    %v199 = vsel %vm185, %v99, 0
    %v202 = vsel %vm185, %v100, 0
    %v205 = vsel %vm185, %v111, 0
    %v208 = vsel %vm185, %v112, 0
    %v211 = vsel %vm185, %v123, 0
    %v214 = vsel %vm185, %v124, 0
    %v217 = vsel %vm185, %v135, 0
    %v220 = vsel %vm185, %v136, 0
    %v223 = vsel %vm185, %v147, 0
    %v226 = vsel %vm185, %v148, 0
    %v229 = vsel %vm185, %v159, 0
    %v232 = vsel %vm185, %v160, 0
    %v235 = vsel %vm185, %v171, 0
    %v238 = vsel %vm185, %v172, 0
    %v241 = vsel %vm185, %v183, 0
    %v244 = vsel %vm185, %v184, 0
    %vm246 = vcmask 1043456
    %v248 = vsel %vm246, %v62, 0
    %250 = vmatpush.msra.mxu0 0.0
    %251 = vmatpush.msra.mxu0 0.0
    %252 = vmatpush.msra.mxu0 0.0
    %253 = vmatpush.msra.mxu0 0.0
    %254 = vmatpush.msra.mxu0 0.0
    %255 = vmatpush.msra.mxu0 0.0
    %256 = vmatpush.msra.mxu0 0.0
    %257 = vmatpush.msra.mxu0 0.0
    %258 = vmatpush.msra.mxu0 0.0
    %259 = vmatpush.msra.mxu0 0.0
    %260 = vmatpush.msra.mxu0 0.0
    %261 = vmatpush.msra.mxu0 0.0
    %262 = vmatpush.msra.mxu0 0.0
    %263 = vmatpush.msra.mxu0 %v248
    %264 = vmatpush.msra.mxu0 %v61
    %265 = vmatpush.msra.mxu0 %v60
    %266 = vmatmul.f32.gmra.mxu0 %v187
    %v267 = vpop.f32.mrf.mxu0
    %v268 = vadd.f32 0.0, %v267
    %269 = vmatmul.f32.gmra.mxu0 %v190
    %v270 = vpop.f32.mrf.mxu0
    %v271 = vadd.f32 0.0, %v270
    %272 = vmatmul.f32.gmra.mxu0 %v193
    %v273 = vpop.f32.mrf.mxu0
    %v274 = vadd.f32 0.0, %v273
    %275 = vmatmul.f32.gmra.mxu0 %v196
    %v276 = vpop.f32.mrf.mxu0
    %v277 = vadd.f32 0.0, %v276
    %278 = vmatmul.f32.gmra.mxu0 %v199
    %v279 = vpop.f32.mrf.mxu0
    %v280 = vadd.f32 0.0, %v279
    %281 = vmatmul.f32.gmra.mxu0 %v202
    %v282 = vpop.f32.mrf.mxu0
    %v283 = vadd.f32 0.0, %v282
    %284 = vmatmul.f32.gmra.mxu0 %v205
    %v285 = vpop.f32.mrf.mxu0
    %v286 = vadd.f32 0.0, %v285
    %287 = vmatmul.f32.gmra.mxu0 %v208
    %v288 = vpop.f32.mrf.mxu0
    %v289 = vadd.f32 0.0, %v288
    %290 = vmatmul.f32.gmra.mxu0 %v211
    %v291 = vpop.f32.mrf.mxu0
    %v292 = vadd.f32 0.0, %v291
    %293 = vmatmul.f32.gmra.mxu0 %v214
    %v294 = vpop.f32.mrf.mxu0
    %v295 = vadd.f32 0.0, %v294
    %296 = vmatmul.f32.gmra.mxu0 %v217
    %v297 = vpop.f32.mrf.mxu0
    %v298 = vadd.f32 0.0, %v297
    %299 = vmatmul.f32.gmra.mxu0 %v220
    %v300 = vpop.f32.mrf.mxu0
    %v301 = vadd.f32 0.0, %v300
    %302 = vmatmul.f32.gmra.mxu0 %v223
    %v303 = vpop.f32.mrf.mxu0
    %v304 = vadd.f32 0.0, %v303
    %305 = vmatmul.f32.gmra.mxu0 %v226
    %v306 = vpop.f32.mrf.mxu0
    %v307 = vadd.f32 0.0, %v306
    %308 = vmatmul.f32.gmra.mxu0 %v229
    %v309 = vpop.f32.mrf.mxu0
    %v310 = vadd.f32 0.0, %v309
    %311 = vmatmul.f32.gmra.mxu0 %v232
    %v312 = vpop.f32.mrf.mxu0
    %v313 = vadd.f32 0.0, %v312
    %314 = vmatmul.f32.gmra.mxu0 %v235
    %v315 = vpop.f32.mrf.mxu0
    %v316 = vadd.f32 0.0, %v315
    %317 = vmatmul.f32.gmra.mxu0 %v238
    %v318 = vpop.f32.mrf.mxu0
    %v319 = vadd.f32 0.0, %v318
    %320 = vmatmul.f32.gmra.mxu0 %v241
    %v321 = vpop.f32.mrf.mxu0
    %v322 = vadd.f32 0.0, %v321
    %323 = vmatmul.f32.gmra.mxu0 %v244
    %v324 = vpop.f32.mrf.mxu0
    %v325 = vadd.f32 0.0, %v324
    %326 = vdwg.mxu0
    %329 = vrot.lane.b32.xlu0 %v274, 8
    %v330 = vpop.permute.xlu0 %329
    %331 = vrot.lane.b32.xlu0 %v277, 8
    %v332 = vpop.permute.xlu0 %331
    %337 = vrot.lane.b32.xlu0 %v280, 16
    %v338 = vpop.permute.xlu0 %337
    %339 = vrot.lane.b32.xlu0 %v283, 16
    %v340 = vpop.permute.xlu0 %339
    %vm343 = vcmask 64512
    %v344 = vsel %vm343, %v268, %v330
    %v345 = vsel %vm343, %v271, %v332
    %vm346 = vcmask 130048
    %v347 = vsel %vm346, %v344, %v338
    %v348 = vsel %vm346, %v345, %v340
    %349 = vrot.lane.b32.xlu0 %v280, 8
    %v350 = vpop.permute.xlu0 %349
    %351 = vrot.lane.b32.xlu0 %v283, 8
    %v352 = vpop.permute.xlu0 %351
    %357 = vrot.lane.b32.xlu0 %v286, 16
    %v358 = vpop.permute.xlu0 %357
    %359 = vrot.lane.b32.xlu0 %v289, 16
    %v360 = vpop.permute.xlu0 %359
    %v363 = vsel %vm343, %v274, %v350
    %v364 = vsel %vm343, %v277, %v352
    %v365 = vsel %vm346, %v363, %v358
    %v366 = vsel %vm346, %v364, %v360
    %367 = vrot.lane.b32.xlu0 %v286, 8
    %v368 = vpop.permute.xlu0 %367
    %369 = vrot.lane.b32.xlu0 %v289, 8
    %v370 = vpop.permute.xlu0 %369
    %375 = vrot.lane.b32.xlu0 %v292, 16
    %v376 = vpop.permute.xlu0 %375
    %377 = vrot.lane.b32.xlu0 %v295, 16
    %v378 = vpop.permute.xlu0 %377
    %v381 = vsel %vm343, %v280, %v368
    %v382 = vsel %vm343, %v283, %v370
    %v383 = vsel %vm346, %v381, %v376
    %v384 = vsel %vm346, %v382, %v378
    %385 = vrot.lane.b32.xlu0 %v292, 8
    %v386 = vpop.permute.xlu0 %385
    %387 = vrot.lane.b32.xlu0 %v295, 8
    %v388 = vpop.permute.xlu0 %387
    %393 = vrot.lane.b32.xlu0 %v298, 16
    %v394 = vpop.permute.xlu0 %393
    %395 = vrot.lane.b32.xlu0 %v301, 16
    %v396 = vpop.permute.xlu0 %395
    %v399 = vsel %vm343, %v286, %v386
    %v400 = vsel %vm343, %v289, %v388
    %v401 = vsel %vm346, %v399, %v394
    %v402 = vsel %vm346, %v400, %v396
    %403 = vrot.lane.b32.xlu0 %v298, 8
    %v404 = vpop.permute.xlu0 %403
    %405 = vrot.lane.b32.xlu0 %v301, 8
    %v406 = vpop.permute.xlu0 %405
    %411 = vrot.lane.b32.xlu0 %v304, 16
    %v412 = vpop.permute.xlu0 %411
    %413 = vrot.lane.b32.xlu0 %v307, 16
    %v414 = vpop.permute.xlu0 %413
    %v417 = vsel %vm343, %v292, %v404
    %v418 = vsel %vm343, %v295, %v406
    %v419 = vsel %vm346, %v417, %v412
    %v420 = vsel %vm346, %v418, %v414
    %421 = vrot.lane.b32.xlu0 %v304, 8
    %v422 = vpop.permute.xlu0 %421
    %423 = vrot.lane.b32.xlu0 %v307, 8
    %v424 = vpop.permute.xlu0 %423
    %429 = vrot.lane.b32.xlu0 %v310, 16
    %v430 = vpop.permute.xlu0 %429
    %431 = vrot.lane.b32.xlu0 %v313, 16
    %v432 = vpop.permute.xlu0 %431
    %v435 = vsel %vm343, %v298, %v422
    %v436 = vsel %vm343, %v301, %v424
    %v437 = vsel %vm346, %v435, %v430
    %v438 = vsel %vm346, %v436, %v432
    %439 = vrot.lane.b32.xlu0 %v310, 8
    %v440 = vpop.permute.xlu0 %439
    %441 = vrot.lane.b32.xlu0 %v313, 8
    %v442 = vpop.permute.xlu0 %441
    %447 = vrot.lane.b32.xlu0 %v316, 16
    %v448 = vpop.permute.xlu0 %447
    %449 = vrot.lane.b32.xlu0 %v319, 16
    %v450 = vpop.permute.xlu0 %449
    %v453 = vsel %vm343, %v304, %v440
    %v454 = vsel %vm343, %v307, %v442
    %v455 = vsel %vm346, %v453, %v448
    %v456 = vsel %vm346, %v454, %v450
    %457 = vrot.lane.b32.xlu0 %v316, 8
    %v458 = vpop.permute.xlu0 %457
    %459 = vrot.lane.b32.xlu0 %v319, 8
    %v460 = vpop.permute.xlu0 %459
    %465 = vrot.lane.b32.xlu0 %v322, 16
    %v466 = vpop.permute.xlu0 %465
    %467 = vrot.lane.b32.xlu0 %v325, 16
    %v468 = vpop.permute.xlu0 %467
    %v471 = vsel %vm343, %v310, %v458
    %v472 = vsel %vm343, %v313, %v460
    %v473 = vsel %vm346, %v471, %v466
    %v474 = vsel %vm346, %v472, %v468
    %475 = vrot.lane.b32.xlu0 %v322, 8
    %v476 = vpop.permute.xlu0 %475
    %477 = vrot.lane.b32.xlu0 %v325, 8
    %v478 = vpop.permute.xlu0 %477
    %v481 = vsel %vm343, %v316, %v476
    %v482 = vsel %vm343, %v319, %v478
    %v483 = vsel %vm346, %v481, 0.0
    %v484 = vsel %vm346, %v482, 0.0
    %v485 = vsel %vm343, %v322, 0.0
    %v486 = vsel %vm343, %v325, 0.0
    %v487 = vsel %vm346, %v485, 0.0
    %v488 = vsel %vm346, %v486, 0.0
    %v489 = vld [vmem:[%s2] sm:$0xff]
    %v490 = vld [vmem:[%s2 + $0x8] sm:$0xff]
    %v491 = vld [vmem:[%s2 + $0x10] sm:$0xff]
    %v492 = vld [vmem:[%s3] sm:$0x1]
    %v494 = vperm.slane %v492, 0
    %vm496 = vcmask 195584
    %v498 = vsel %vm496, %v347, 0
    %v501 = vsel %vm496, %v348, 0
    %v504 = vsel %vm496, %v365, 0
    %v507 = vsel %vm496, %v366, 0
    %v510 = vsel %vm496, %v383, 0
    %v513 = vsel %vm496, %v384, 0
    %v516 = vsel %vm496, %v401, 0
    %v519 = vsel %vm496, %v402, 0
    %v522 = vsel %vm496, %v419, 0
    %v525 = vsel %vm496, %v420, 0
    %v528 = vsel %vm496, %v437, 0
    %v531 = vsel %vm496, %v438, 0
    %v534 = vsel %vm496, %v455, 0
    %v537 = vsel %vm496, %v456, 0
    %v540 = vsel %vm496, %v473, 0
    %v543 = vsel %vm496, %v474, 0
    %v546 = vsel %vm496, %v483, 0
    %v549 = vsel %vm496, %v484, 0
    %v552 = vsel %vm496, %v487, 0
    %v555 = vsel %vm496, %v488, 0
    %557 = vmatpush.msra.mxu0 0.0
    %558 = vmatpush.msra.mxu0 0.0
    %559 = vmatpush.msra.mxu0 0.0
    %560 = vmatpush.msra.mxu0 0.0
    %561 = vmatpush.msra.mxu0 0.0
    %562 = vmatpush.msra.mxu0 0.0
    %563 = vmatpush.msra.mxu0 0.0
    %564 = vmatpush.msra.mxu0 0.0
    %565 = vmatpush.msra.mxu0 0.0
    %566 = vmatpush.msra.mxu0 0.0
    %567 = vmatpush.msra.mxu0 0.0
    %568 = vmatpush.msra.mxu0 0.0
    %569 = vmatpush.msra.mxu0 0.0
    %570 = vmatpush.msra.mxu0 %v491
    %571 = vmatpush.msra.mxu0 %v490
    %572 = vmatpush.msra.mxu0 %v489
    %573 = vmatmul.f32.gmra.mxu0 %v498
    %v574 = vpop.f32.mrf.mxu0
    %v575 = vadd.f32 %v494, %v574
    %576 = vmatmul.f32.gmra.mxu0 %v501
    %v577 = vpop.f32.mrf.mxu0
    %v578 = vadd.f32 %v494, %v577
    %579 = vmatmul.f32.gmra.mxu0 %v504
    %v580 = vpop.f32.mrf.mxu0
    %v581 = vadd.f32 %v494, %v580
    %582 = vmatmul.f32.gmra.mxu0 %v507
    %v583 = vpop.f32.mrf.mxu0
    %v584 = vadd.f32 %v494, %v583
    %585 = vmatmul.f32.gmra.mxu0 %v510
    %v586 = vpop.f32.mrf.mxu0
    %v587 = vadd.f32 %v494, %v586
    %588 = vmatmul.f32.gmra.mxu0 %v513
    %v589 = vpop.f32.mrf.mxu0
    %v590 = vadd.f32 %v494, %v589
    %591 = vmatmul.f32.gmra.mxu0 %v516
    %v592 = vpop.f32.mrf.mxu0
    %v593 = vadd.f32 %v494, %v592
    %594 = vmatmul.f32.gmra.mxu0 %v519
    %v595 = vpop.f32.mrf.mxu0
    %v596 = vadd.f32 %v494, %v595
    %597 = vmatmul.f32.gmra.mxu0 %v522
    %v598 = vpop.f32.mrf.mxu0
    %v599 = vadd.f32 %v494, %v598
    %600 = vmatmul.f32.gmra.mxu0 %v525
    %v601 = vpop.f32.mrf.mxu0
    %v602 = vadd.f32 %v494, %v601
    %603 = vmatmul.f32.gmra.mxu0 %v528
    %v604 = vpop.f32.mrf.mxu0
    %v605 = vadd.f32 %v494, %v604
    %606 = vmatmul.f32.gmra.mxu0 %v531
    %v607 = vpop.f32.mrf.mxu0
    %v608 = vadd.f32 %v494, %v607
    %609 = vmatmul.f32.gmra.mxu0 %v534
    %v610 = vpop.f32.mrf.mxu0
    %v611 = vadd.f32 %v494, %v610
    %612 = vmatmul.f32.gmra.mxu0 %v537
    %v613 = vpop.f32.mrf.mxu0
    %v614 = vadd.f32 %v494, %v613
    %615 = vmatmul.f32.gmra.mxu0 %v540
    %v616 = vpop.f32.mrf.mxu0
    %v617 = vadd.f32 %v494, %v616
    %618 = vmatmul.f32.gmra.mxu0 %v543
    %v619 = vpop.f32.mrf.mxu0
    %v620 = vadd.f32 %v494, %v619
    %621 = vmatmul.f32.gmra.mxu0 %v546
    %v622 = vpop.f32.mrf.mxu0
    %v623 = vadd.f32 %v494, %v622
    %624 = vmatmul.f32.gmra.mxu0 %v549
    %v625 = vpop.f32.mrf.mxu0
    %v626 = vadd.f32 %v494, %v625
    %627 = vmatmul.f32.gmra.mxu0 %v552
    %v628 = vpop.f32.mrf.mxu0
    %v629 = vadd.f32 %v494, %v628
    %630 = vmatmul.f32.gmra.mxu0 %v555
    %v631 = vpop.f32.mrf.mxu0
    %v632 = vadd.f32 %v494, %v631
    %633 = vdwg.mxu0
    %v634 = vtanh.pop %v575
    %v635 = vtanh.pop %v578
    %v636 = vtanh.pop %v581
    %v637 = vtanh.pop %v584
    %v638 = vtanh.pop %v587
    %v639 = vtanh.pop %v590
    %v640 = vtanh.pop %v593
    %v641 = vtanh.pop %v596
    %v642 = vtanh.pop %v599
    %v643 = vtanh.pop %v602
    %v644 = vtanh.pop %v605
    %v645 = vtanh.pop %v608
    %v646 = vtanh.pop %v611
    %v647 = vtanh.pop %v614
    %v648 = vtanh.pop %v617
    %v649 = vtanh.pop %v620
    %v650 = vtanh.pop %v623
    %v651 = vtanh.pop %v626
    %v652 = vtanh.pop %v629
    %v653 = vtanh.pop %v632
    %v654 = vld [vmem:[%s4] sm:$0x1]
    %v655 = vperm.slane %v654, 0
    %v656 = vadd.f32 %v634, %v655
    %v657 = vadd.f32 %v635, %v655
    %v658 = vmax.f32 %v656, -1e+30
    %v659 = vmax.f32 %v657, -1e+30
    %v660 = vld [vmem:[%s4 + $0x1] sm:$0x1]
    %v661 = vperm.slane %v660, 0
    %v662 = vadd.f32 %v636, %v661
    %v663 = vadd.f32 %v637, %v661
    %v664 = vmax.f32 %v658, %v662
    %v665 = vmax.f32 %v659, %v663
    %v666 = vld [vmem:[%s4 + $0x2] sm:$0x1]
    %v667 = vperm.slane %v666, 0
    %v668 = vadd.f32 %v638, %v667
    %v669 = vadd.f32 %v639, %v667
    %v670 = vmax.f32 %v664, %v668
    %v671 = vmax.f32 %v665, %v669
    %v672 = vld [vmem:[%s4 + $0x3] sm:$0x1]
    %v673 = vperm.slane %v672, 0
    %v674 = vadd.f32 %v640, %v673
    %v675 = vadd.f32 %v641, %v673
    %v676 = vmax.f32 %v670, %v674
    %v677 = vmax.f32 %v671, %v675
    %v678 = vld [vmem:[%s4 + $0x4] sm:$0x1]
    %v679 = vperm.slane %v678, 0
    %v680 = vadd.f32 %v642, %v679
    %v681 = vadd.f32 %v643, %v679
    %v682 = vmax.f32 %v676, %v680
    %v683 = vmax.f32 %v677, %v681
    %v684 = vld [vmem:[%s4 + $0x5] sm:$0x1]
    %v685 = vperm.slane %v684, 0
    %v686 = vadd.f32 %v644, %v685
    %v687 = vadd.f32 %v645, %v685
    %v688 = vmax.f32 %v682, %v686
    %v689 = vmax.f32 %v683, %v687
    %v690 = vld [vmem:[%s4 + $0x6] sm:$0x1]
    %v691 = vperm.slane %v690, 0
    %v692 = vadd.f32 %v646, %v691
    %v693 = vadd.f32 %v647, %v691
    %v694 = vmax.f32 %v688, %v692
    %v695 = vmax.f32 %v689, %v693
    %v696 = vld [vmem:[%s4 + $0x7] sm:$0x1]
    %v697 = vperm.slane %v696, 0
    %v698 = vadd.f32 %v648, %v697
    %v699 = vadd.f32 %v649, %v697
    %v700 = vmax.f32 %v694, %v698
    %v701 = vmax.f32 %v695, %v699
    %v702 = vld [vmem:[%s4 + $0x8] sm:$0x1]
    %v703 = vperm.slane %v702, 0
    %v704 = vadd.f32 %v650, %v703
    %v705 = vadd.f32 %v651, %v703
    %v706 = vmax.f32 %v700, %v704
    %v707 = vmax.f32 %v701, %v705
    %v708 = vld [vmem:[%s4 + $0x9] sm:$0x1]
    %v709 = vperm.slane %v708, 0
    %v710 = vadd.f32 %v652, %v709
    %v711 = vadd.f32 %v653, %v709
    %v712 = vmax.f32 %v706, %v710
    %v713 = vmax.f32 %v707, %v711
    %v714 = vld [vmem:[%s5] sm:$0xff]
    %v715 = vld [vmem:[%s5 + $0x8] sm:$0xff]
    %v716 = vld [vmem:[%s5 + $0x10] sm:$0xff]
    %v717 = vld [vmem:[%s6] sm:$0x1]
    %v719 = vperm.slane %v717, 0
    %v722 = vsel %vm496, %v712, 0
    %v725 = vsel %vm496, %v713, 0
    %727 = vmatpush.msra.mxu0 0.0
    %728 = vmatpush.msra.mxu0 0.0
    %729 = vmatpush.msra.mxu0 0.0
    %730 = vmatpush.msra.mxu0 0.0
    %731 = vmatpush.msra.mxu0 0.0
    %732 = vmatpush.msra.mxu0 0.0
    %733 = vmatpush.msra.mxu0 0.0
    %734 = vmatpush.msra.mxu0 0.0
    %735 = vmatpush.msra.mxu0 0.0
    %736 = vmatpush.msra.mxu0 0.0
    %737 = vmatpush.msra.mxu0 0.0
    %738 = vmatpush.msra.mxu0 0.0
    %739 = vmatpush.msra.mxu0 0.0
    %740 = vmatpush.msra.mxu0 %v716
    %741 = vmatpush.msra.mxu0 %v715
    %742 = vmatpush.msra.mxu0 %v714
    %743 = vmatmul.f32.gmra.mxu0 %v722
    %v744 = vpop.f32.mrf.mxu0
    %v745 = vadd.f32 %v719, %v744
    %746 = vmatmul.f32.gmra.mxu0 %v725
    %v747 = vpop.f32.mrf.mxu0
    %v748 = vadd.f32 %v719, %v747
    %749 = vdwg.mxu0
    %v750 = vxor.u32 %v745, 2147483648
    %v751 = vxor.u32 %v748, 2147483648
    %v752 = vmul.f32 %v750, 1.442695
    %v753 = vpow.pop %v752
    %v754 = vmul.f32 %v751, 1.442695
    %v755 = vpow.pop %v754
    %v756 = vadd.f32 %v753, 1.0
    %v757 = vadd.f32 %v755, 1.0
    %v758 = vrcp.pop %v756
    %v759 = vmul.f32 %v756, %v758
    %v760 = vsub.f32 1.0, %v759
    %v761 = vmul.f32 %v758, %v760
    %v762 = vadd.f32 %v758, %v761
    %vm763 = vweird.f32 %v756
    %vm764 = vweird.f32 %v758
    %vm765 = vmor %vm763, %vm764
    %v766 = vsel %vm765, %v758, %v762
    %v767 = vand.u32 2147483647, %v756
    %vm768 = vcmp.eq.f32.partialorder %v767, 8.507059e+37
    %v769 = vand.u32 %v756, 2147483648
    %v770 = vor.u32 1.1754944e-38, %v769
    %v771 = vsel %vm768, %v770, %v766
    %v772 = vmul.f32 1.0, %v771
    %v773 = vrcp.pop %v757
    %v774 = vmul.f32 %v757, %v773
    %v775 = vsub.f32 1.0, %v774
    %v776 = vmul.f32 %v773, %v775
    %v777 = vadd.f32 %v773, %v776
    %vm778 = vweird.f32 %v757
    %vm779 = vweird.f32 %v773
    %vm780 = vmor %vm778, %vm779
    %v781 = vsel %vm780, %v773, %v777
    %v782 = vand.u32 2147483647, %v757
    %vm783 = vcmp.eq.f32.partialorder %v782, 8.507059e+37
    %v784 = vand.u32 %v757, 2147483648
    %v785 = vor.u32 1.1754944e-38, %v784
    %v786 = vsel %vm783, %v785, %v781
    %v787 = vmul.f32 1.0, %v786
    %v788 = vmax.f32 %v745, 0.0
    %v789 = vmax.f32 %v748, 0.0
    %792 = vrot.lane.b32.xlu0 %v788, 104
    %v793 = vpop.permute.xlu0 %792
    %794 = vrot.lane.b32.xlu0 %v789, 104
    %v795 = vpop.permute.xlu0 %794
    %v798 = vmul.f32 %v772, %v793
    %v799 = vmul.f32 %v787, %v795
    %v800 = vsub.f32 1.0, %v772
    %v801 = vsub.f32 1.0, %v787
    %v802 = vmul.f32 %v800, %v712
    %v803 = vmul.f32 %v801, %v713
    %v804 = vadd.f32 %v798, %v802
    %v805 = vadd.f32 %v799, %v803
    %v806 = vld [vmem:[%s7] sm:$0xff]
    %v807 = vld [vmem:[%s7 + $0x8] sm:$0xff]
    %v808 = vld [vmem:[%s7 + $0x10] sm:$0xff]
    %v809 = vld [vmem:[%s9] sm:$0x1]
    %v811 = vperm.slane %v809, 0
    %v814 = vsel %vm496, %v804, 0
    %v817 = vsel %vm496, %v805, 0
    %819 = vmatpush.msra.mxu0 0.0
    %820 = vmatpush.msra.mxu0 0.0
    %821 = vmatpush.msra.mxu0 0.0
    %822 = vmatpush.msra.mxu0 0.0
    %823 = vmatpush.msra.mxu0 0.0
    %824 = vmatpush.msra.mxu0 0.0
    %825 = vmatpush.msra.mxu0 0.0
    %826 = vmatpush.msra.mxu0 0.0
    %827 = vmatpush.msra.mxu0 0.0
    %828 = vmatpush.msra.mxu0 0.0
    %829 = vmatpush.msra.mxu0 0.0
    %830 = vmatpush.msra.mxu0 0.0
    %831 = vmatpush.msra.mxu0 0.0
    %832 = vmatpush.msra.mxu0 %v808
    %833 = vmatpush.msra.mxu0 %v807
    %834 = vmatpush.msra.mxu0 %v806
    %835 = vmatmul.f32.gmra.mxu0 %v814
    %v836 = vpop.f32.mrf.mxu0
    %v837 = vadd.f32 %v811, %v836
    %838 = vmatmul.f32.gmra.mxu0 %v817
    %v839 = vpop.f32.mrf.mxu0
    %v840 = vadd.f32 %v811, %v839
    %841 = vdwg.mxu0
    %v842 = vld [vmem:[%s8] sm:$0xff]
    %v843 = vld [vmem:[%s8 + $0x8] sm:$0xff]
    %v844 = vld [vmem:[%s8 + $0x10] sm:$0xff]
    %v845 = vld [vmem:[%s8 + $0x18] sm:$0xff]
    %v846 = vld [vmem:[%s10] sm:$0xff]
    %v847 = vld [vmem:[%s10 + $0x8] sm:$0xff]
    %v848 = vld [vmem:[%s10 + $0x10] sm:$0xff]
    %v849 = vld [vmem:[%s10 + $0x18] sm:$0xff]
    %v850 = vld [vmem:[%s10 + $0x20] sm:$0xff]
    %v851 = vld [vmem:[%s10 + $0x28] sm:$0xff]
    %v852 = vld [vmem:[%s10 + $0x30] sm:$0xff]
    %v853 = vld [vmem:[%s10 + $0x38] sm:$0xff]
    %v854 = vld [vmem:[%s11] sm:$0x1]
    %v856 = vperm.slane %v854, 0
    %v858 = vld [vmem:[%s14] sm:$0x3]
    %s859 = scalar_lea.vmem %s14, 2
    %v860 = vld [vmem:[%s859] sm:$0x3]
    %v861 = vld [vmem:[%s15] sm:$0x3]
    %s862 = scalar_lea.vmem %s15, 2
    %v863 = vld [vmem:[%s862] sm:$0x3]
    %vm864 = vcmask 261120
    %v866 = vsel %vm864, %v858, 0
    %868 = vmatpush.msra.mxu0 0.0
    %869 = vmatpush.msra.mxu0 0.0
    %870 = vmatpush.msra.mxu0 0.0
    %871 = vmatpush.msra.mxu0 0.0
    %872 = vmatpush.msra.mxu0 0.0
    %873 = vmatpush.msra.mxu0 0.0
    %874 = vmatpush.msra.mxu0 0.0
    %875 = vmatpush.msra.mxu0 0.0
    %876 = vmatpush.msra.mxu0 0.0
    %877 = vmatpush.msra.mxu0 0.0
    %878 = vmatpush.msra.mxu0 0.0
    %879 = vmatpush.msra.mxu0 0.0
    %880 = vmatpush.msra.mxu0 %v845
    %881 = vmatpush.msra.mxu0 %v844
    %882 = vmatpush.msra.mxu0 %v843
    %883 = vmatpush.msra.mxu0 %v842
    %884 = vmatmul.f32.gmra.mxu0 %v866
    %v885 = vpop.f32.mrf.mxu0
    %v886 = vadd.f32 0.0, %v885
    %887 = vdwg.mxu0
    %v888 = vadd.f32 %v837, %v886
    %v889 = vxor.u32 %v888, 2147483648
    %v890 = vmul.f32 %v889, 1.442695
    %v891 = vpow.pop %v890
    %v892 = vadd.f32 %v891, 1.0
    %v893 = vrcp.pop %v892
    %v894 = vmul.f32 %v892, %v893
    %v895 = vsub.f32 1.0, %v894
    %v896 = vmul.f32 %v893, %v895
    %v897 = vadd.f32 %v893, %v896
    %vm898 = vweird.f32 %v892
    %vm899 = vweird.f32 %v893
    %vm900 = vmor %vm898, %vm899
    %v901 = vsel %vm900, %v893, %v897
    %v902 = vand.u32 2147483647, %v892
    %vm903 = vcmp.eq.f32.partialorder %v902, 8.507059e+37
    %v904 = vand.u32 %v892, 2147483648
    %v905 = vor.u32 1.1754944e-38, %v904
    %v906 = vsel %vm903, %v905, %v901
    %v907 = vmul.f32 1.0, %v906
    %v908 = vtanh.pop %v888
    %910 = vrot.lane.b32.xlu0 %v861, 32
    %v911 = vpop.permute.xlu0 %910
    %v913 = vmul.f32 %v907, %v911
    %915 = vrot.lane.b32.xlu0 %v908, 64
    %v916 = vpop.permute.xlu0 %915
    %v918 = vmul.f32 %v907, %v916
    %920 = vrot.lane.b32.xlu0 %v918, 32
    %v921 = vpop.permute.xlu0 %920
    %v923 = vadd.f32 %v913, %v921
    %v924 = vtanh.pop %v923
    %926 = vrot.lane.b32.xlu0 %v924, 64
    %v927 = vpop.permute.xlu0 %926
    %v929 = vmul.f32 %v907, %v927
    %931 = vrot.lane.b32.xlu0 %v929, 32
    %v932 = vpop.permute.xlu0 %931
    %935 = vrot.lane.b32.xlu0 %v860, 32
    %v936 = vpop.permute.xlu0 %935
    %v938 = vsel %vm864, %v932, %v936
    %vm939 = vcmask 523264
    %v941 = vsel %vm939, %v938, 0
    %943 = vmatpush.msra.mxu0 0.0
    %944 = vmatpush.msra.mxu0 0.0
    %945 = vmatpush.msra.mxu0 0.0
    %946 = vmatpush.msra.mxu0 0.0
    %947 = vmatpush.msra.mxu0 0.0
    %948 = vmatpush.msra.mxu0 0.0
    %949 = vmatpush.msra.mxu0 0.0
    %950 = vmatpush.msra.mxu0 0.0
    %951 = vmatpush.msra.mxu0 %v853
    %952 = vmatpush.msra.mxu0 %v852
    %953 = vmatpush.msra.mxu0 %v851
    %954 = vmatpush.msra.mxu0 %v850
    %955 = vmatpush.msra.mxu0 %v849
    %956 = vmatpush.msra.mxu0 %v848
    %957 = vmatpush.msra.mxu0 %v847
    %958 = vmatpush.msra.mxu0 %v846
    %959 = vmatmul.f32.gmra.mxu0 %v941
    %v960 = vpop.f32.mrf.mxu0
    %v961 = vadd.f32 %v856, %v960
    %962 = vdwg.mxu0
    %v963 = vxor.u32 %v961, 2147483648
    %v964 = vmul.f32 %v963, 1.442695
    %v965 = vpow.pop %v964
    %v966 = vadd.f32 %v965, 1.0
    %v967 = vrcp.pop %v966
    %v968 = vmul.f32 %v966, %v967
    %v969 = vsub.f32 1.0, %v968
    %v970 = vmul.f32 %v967, %v969
    %v971 = vadd.f32 %v967, %v970
    %vm972 = vweird.f32 %v966
    %vm973 = vweird.f32 %v967
    %vm974 = vmor %vm972, %vm973
    %v975 = vsel %vm974, %v967, %v971
    %v976 = vand.u32 2147483647, %v966
    %vm977 = vcmp.eq.f32.partialorder %v976, 8.507059e+37
    %v978 = vand.u32 %v966, 2147483648
    %v979 = vor.u32 1.1754944e-38, %v978
    %v980 = vsel %vm977, %v979, %v975
    %v981 = vmul.f32 1.0, %v980
    %v982 = vtanh.pop %v961
    %984 = vrot.lane.b32.xlu0 %v863, 32
    %v985 = vpop.permute.xlu0 %984
    %v987 = vmul.f32 %v981, %v985
    %989 = vrot.lane.b32.xlu0 %v982, 64
    %v990 = vpop.permute.xlu0 %989
    %v992 = vmul.f32 %v981, %v990
    %994 = vrot.lane.b32.xlu0 %v992, 32
    %v995 = vpop.permute.xlu0 %994
    %v997 = vadd.f32 %v987, %v995
    %v998 = vtanh.pop %v997
    %1000 = vrot.lane.b32.xlu0 %v998, 64
    %v1001 = vpop.permute.xlu0 %1000
    %v1003 = vmul.f32 %v981, %v1001
    %v1004 = vsel %vm864, %v932, 0
    %1006 = vmatpush.msra.mxu0 0.0
    %1007 = vmatpush.msra.mxu0 0.0
    %1008 = vmatpush.msra.mxu0 0.0
    %1009 = vmatpush.msra.mxu0 0.0
    %1010 = vmatpush.msra.mxu0 0.0
    %1011 = vmatpush.msra.mxu0 0.0
    %1012 = vmatpush.msra.mxu0 0.0
    %1013 = vmatpush.msra.mxu0 0.0
    %1014 = vmatpush.msra.mxu0 0.0
    %1015 = vmatpush.msra.mxu0 0.0
    %1016 = vmatpush.msra.mxu0 0.0
    %1017 = vmatpush.msra.mxu0 0.0
    %1018 = vmatpush.msra.mxu0 %v845
    %1019 = vmatpush.msra.mxu0 %v844
    %1020 = vmatpush.msra.mxu0 %v843
    %1021 = vmatpush.msra.mxu0 %v842
    %1022 = vmatmul.f32.gmra.mxu0 %v1004
    %v1023 = vpop.f32.mrf.mxu0
    %v1024 = vadd.f32 0.0, %v1023
    %1025 = vdwg.mxu0
    %v1027 = vrot.slane %v1024, 6
    %v1029 = vadd.f32 %v837, %v1027
    %v1030 = vxor.u32 %v1029, 2147483648
    %v1031 = vmul.f32 %v1030, 1.442695
    %v1032 = vpow.pop %v1031
    %v1033 = vadd.f32 %v1032, 1.0
    %v1034 = vrcp.pop %v1033
    %v1035 = vmul.f32 %v1033, %v1034
    %v1036 = vsub.f32 1.0, %v1035
    %v1037 = vmul.f32 %v1034, %v1036
    %v1038 = vadd.f32 %v1034, %v1037
    %vm1039 = vweird.f32 %v1033
    %vm1040 = vweird.f32 %v1034
    %vm1041 = vmor %vm1039, %vm1040
    %v1042 = vsel %vm1041, %v1034, %v1038
    %v1043 = vand.u32 2147483647, %v1033
    %vm1044 = vcmp.eq.f32.partialorder %v1043, 8.507059e+37
    %v1045 = vand.u32 %v1033, 2147483648
    %v1046 = vor.u32 1.1754944e-38, %v1045
    %v1047 = vsel %vm1044, %v1046, %v1042
    %v1048 = vmul.f32 1.0, %v1047
    %v1049 = vtanh.pop %v1029
    %v1051 = vrot.slane %v923, 6
    %v1053 = vmul.f32 %v1048, %v1051
    %1055 = vrot.lane.b32.xlu0 %v1049, 64
    %v1056 = vpop.permute.xlu0 %1055
    %v1058 = vmul.f32 %v1048, %v1056
    %1060 = vrot.lane.b32.xlu0 %v1058, 32
    %v1061 = vpop.permute.xlu0 %1060
    %v1063 = vadd.f32 %v1053, %v1061
    %v1064 = vtanh.pop %v1063
    %1066 = vrot.lane.b32.xlu0 %v1064, 64
    %v1067 = vpop.permute.xlu0 %1066
    %v1069 = vmul.f32 %v1048, %v1067
    %1071 = vrot.lane.b32.xlu0 %v1069, 32
    %v1072 = vpop.permute.xlu0 %1071
    %v1075 = vrot.slane %v1003, 6
    %1076 = vrot.lane.b32.xlu0 %v1075, 64
    %v1077 = vpop.permute.xlu0 %1076
    %v1079 = vsel %vm864, %v1072, %v1077
    %v1081 = vrot.slane %v1079, 2
    %v1082 = vsel %vm939, %v1081, 0
    %1084 = vmatpush.msra.mxu0 0.0
    %1085 = vmatpush.msra.mxu0 0.0
    %1086 = vmatpush.msra.mxu0 0.0
    %1087 = vmatpush.msra.mxu0 0.0
    %1088 = vmatpush.msra.mxu0 0.0
    %1089 = vmatpush.msra.mxu0 0.0
    %1090 = vmatpush.msra.mxu0 0.0
    %1091 = vmatpush.msra.mxu0 0.0
    %1092 = vmatpush.msra.mxu0 %v853
    %1093 = vmatpush.msra.mxu0 %v852
    %1094 = vmatpush.msra.mxu0 %v851
    %1095 = vmatpush.msra.mxu0 %v850
    %1096 = vmatpush.msra.mxu0 %v849
    %1097 = vmatpush.msra.mxu0 %v848
    %1098 = vmatpush.msra.mxu0 %v847
    %1099 = vmatpush.msra.mxu0 %v846
    %1100 = vmatmul.f32.gmra.mxu0 %v1082
    %v1101 = vpop.f32.mrf.mxu0
    %v1102 = vadd.f32 %v856, %v1101
    %1103 = vdwg.mxu0
    %v1104 = vxor.u32 %v1102, 2147483648
    %v1105 = vmul.f32 %v1104, 1.442695
    %v1106 = vpow.pop %v1105
    %v1107 = vadd.f32 %v1106, 1.0
    %v1108 = vrcp.pop %v1107
    %v1109 = vmul.f32 %v1107, %v1108
    %v1110 = vsub.f32 1.0, %v1109
    %v1111 = vmul.f32 %v1108, %v1110
    %v1112 = vadd.f32 %v1108, %v1111
    %vm1113 = vweird.f32 %v1107
    %vm1114 = vweird.f32 %v1108
    %vm1115 = vmor %vm1113, %vm1114
    %v1116 = vsel %vm1115, %v1108, %v1112
    %v1117 = vand.u32 2147483647, %v1107
    %vm1118 = vcmp.eq.f32.partialorder %v1117, 8.507059e+37
    %v1119 = vand.u32 %v1107, 2147483648
    %v1120 = vor.u32 1.1754944e-38, %v1119
    %v1121 = vsel %vm1118, %v1120, %v1116
    %v1122 = vmul.f32 1.0, %v1121
    %v1123 = vtanh.pop %v1102
    %v1124 = vmul.f32 %v1122, %v997
    %1126 = vrot.lane.b32.xlu0 %v1123, 64
    %v1127 = vpop.permute.xlu0 %1126
    %v1129 = vmul.f32 %v1122, %v1127
    %1131 = vrot.lane.b32.xlu0 %v1129, 32
    %v1132 = vpop.permute.xlu0 %1131
    %v1134 = vadd.f32 %v1124, %v1132
    %v1135 = vtanh.pop %v1134
    %1137 = vrot.lane.b32.xlu0 %v1135, 64
    %v1138 = vpop.permute.xlu0 %1137
    %v1140 = vmul.f32 %v1122, %v1138
    %v1141 = vrot.slane %v1069, 2
    %1142 = vrot.lane.b32.xlu0 %v1141, 32
    %v1143 = vpop.permute.xlu0 %1142
    %v1144 = vsel %vm864, %v1143, 0
    %1146 = vmatpush.msra.mxu0 0.0
    %1147 = vmatpush.msra.mxu0 0.0
    %1148 = vmatpush.msra.mxu0 0.0
    %1149 = vmatpush.msra.mxu0 0.0
    %1150 = vmatpush.msra.mxu0 0.0
    %1151 = vmatpush.msra.mxu0 0.0
    %1152 = vmatpush.msra.mxu0 0.0
    %1153 = vmatpush.msra.mxu0 0.0
    %1154 = vmatpush.msra.mxu0 0.0
    %1155 = vmatpush.msra.mxu0 0.0
    %1156 = vmatpush.msra.mxu0 0.0
    %1157 = vmatpush.msra.mxu0 0.0
    %1158 = vmatpush.msra.mxu0 %v845
    %1159 = vmatpush.msra.mxu0 %v844
    %1160 = vmatpush.msra.mxu0 %v843
    %1161 = vmatpush.msra.mxu0 %v842
    %1162 = vmatmul.f32.gmra.mxu0 %v1144
    %v1163 = vpop.f32.mrf.mxu0
    %v1164 = vadd.f32 0.0, %v1163
    %1165 = vdwg.mxu0
    %v1167 = vrot.slane %v1164, 4
    %v1169 = vadd.f32 %v837, %v1167
    %v1170 = vxor.u32 %v1169, 2147483648
    %v1171 = vmul.f32 %v1170, 1.442695
    %v1172 = vpow.pop %v1171
    %v1173 = vadd.f32 %v1172, 1.0
    %v1174 = vrcp.pop %v1173
    %v1175 = vmul.f32 %v1173, %v1174
    %v1176 = vsub.f32 1.0, %v1175
    %v1177 = vmul.f32 %v1174, %v1176
    %v1178 = vadd.f32 %v1174, %v1177
    %vm1179 = vweird.f32 %v1173
    %vm1180 = vweird.f32 %v1174
    %vm1181 = vmor %vm1179, %vm1180
    %v1182 = vsel %vm1181, %v1174, %v1178
    %v1183 = vand.u32 2147483647, %v1173
    %vm1184 = vcmp.eq.f32.partialorder %v1183, 8.507059e+37
    %v1185 = vand.u32 %v1173, 2147483648
    %v1186 = vor.u32 1.1754944e-38, %v1185
    %v1187 = vsel %vm1184, %v1186, %v1182
    %v1188 = vmul.f32 1.0, %v1187
    %v1189 = vtanh.pop %v1169
    %v1191 = vrot.slane %v1063, 6
    %v1193 = vmul.f32 %v1188, %v1191
    %1195 = vrot.lane.b32.xlu0 %v1189, 64
    %v1196 = vpop.permute.xlu0 %1195
    %v1198 = vmul.f32 %v1188, %v1196
    %1200 = vrot.lane.b32.xlu0 %v1198, 32
    %v1201 = vpop.permute.xlu0 %1200
    %v1203 = vadd.f32 %v1193, %v1201
    %v1204 = vtanh.pop %v1203
    %1206 = vrot.lane.b32.xlu0 %v1204, 64
    %v1207 = vpop.permute.xlu0 %1206
    %v1209 = vmul.f32 %v1188, %v1207
    %1211 = vrot.lane.b32.xlu0 %v1209, 32
    %v1212 = vpop.permute.xlu0 %1211
    %v1215 = vrot.slane %v1140, 4
    %1216 = vrot.lane.b32.xlu0 %v1215, 64
    %v1217 = vpop.permute.xlu0 %1216
    %v1219 = vsel %vm864, %v1212, %v1217
    %v1221 = vrot.slane %v1219, 4
    %v1222 = vsel %vm939, %v1221, 0
    %1224 = vmatpush.msra.mxu0 0.0
    %1225 = vmatpush.msra.mxu0 0.0
    %1226 = vmatpush.msra.mxu0 0.0
    %1227 = vmatpush.msra.mxu0 0.0
    %1228 = vmatpush.msra.mxu0 0.0
    %1229 = vmatpush.msra.mxu0 0.0
    %1230 = vmatpush.msra.mxu0 0.0
    %1231 = vmatpush.msra.mxu0 0.0
    %1232 = vmatpush.msra.mxu0 %v853
    %1233 = vmatpush.msra.mxu0 %v852
    %1234 = vmatpush.msra.mxu0 %v851
    %1235 = vmatpush.msra.mxu0 %v850
    %1236 = vmatpush.msra.mxu0 %v849
    %1237 = vmatpush.msra.mxu0 %v848
    %1238 = vmatpush.msra.mxu0 %v847
    %1239 = vmatpush.msra.mxu0 %v846
    %1240 = vmatmul.f32.gmra.mxu0 %v1222
    %v1241 = vpop.f32.mrf.mxu0
    %v1242 = vadd.f32 %v856, %v1241
    %1243 = vdwg.mxu0
    %v1244 = vxor.u32 %v1242, 2147483648
    %v1245 = vmul.f32 %v1244, 1.442695
    %v1246 = vpow.pop %v1245
    %v1247 = vadd.f32 %v1246, 1.0
    %v1248 = vrcp.pop %v1247
    %v1249 = vmul.f32 %v1247, %v1248
    %v1250 = vsub.f32 1.0, %v1249
    %v1251 = vmul.f32 %v1248, %v1250
    %v1252 = vadd.f32 %v1248, %v1251
    %vm1253 = vweird.f32 %v1247
    %vm1254 = vweird.f32 %v1248
    %vm1255 = vmor %vm1253, %vm1254
    %v1256 = vsel %vm1255, %v1248, %v1252
    %v1257 = vand.u32 2147483647, %v1247
    %vm1258 = vcmp.eq.f32.partialorder %v1257, 8.507059e+37
    %v1259 = vand.u32 %v1247, 2147483648
    %v1260 = vor.u32 1.1754944e-38, %v1259
    %v1261 = vsel %vm1258, %v1260, %v1256
    %v1262 = vmul.f32 1.0, %v1261
    %v1263 = vtanh.pop %v1242
    %v1264 = vmul.f32 %v1262, %v1134
    %1266 = vrot.lane.b32.xlu0 %v1263, 64
    %v1267 = vpop.permute.xlu0 %1266
    %v1269 = vmul.f32 %v1262, %v1267
    %1271 = vrot.lane.b32.xlu0 %v1269, 32
    %v1272 = vpop.permute.xlu0 %1271
    %v1274 = vadd.f32 %v1264, %v1272
    %v1275 = vtanh.pop %v1274
    %1277 = vrot.lane.b32.xlu0 %v1275, 64
    %v1278 = vpop.permute.xlu0 %1277
    %v1280 = vmul.f32 %v1262, %v1278
    %v1281 = vrot.slane %v1209, 4
    %1282 = vrot.lane.b32.xlu0 %v1281, 32
    %v1283 = vpop.permute.xlu0 %1282
    %v1284 = vsel %vm864, %v1283, 0
    %1286 = vmatpush.msra.mxu0 0.0
    %1287 = vmatpush.msra.mxu0 0.0
    %1288 = vmatpush.msra.mxu0 0.0
    %1289 = vmatpush.msra.mxu0 0.0
    %1290 = vmatpush.msra.mxu0 0.0
    %1291 = vmatpush.msra.mxu0 0.0
    %1292 = vmatpush.msra.mxu0 0.0
    %1293 = vmatpush.msra.mxu0 0.0
    %1294 = vmatpush.msra.mxu0 0.0
    %1295 = vmatpush.msra.mxu0 0.0
    %1296 = vmatpush.msra.mxu0 0.0
    %1297 = vmatpush.msra.mxu0 0.0
    %1298 = vmatpush.msra.mxu0 %v845
    %1299 = vmatpush.msra.mxu0 %v844
    %1300 = vmatpush.msra.mxu0 %v843
    %1301 = vmatpush.msra.mxu0 %v842
    %1302 = vmatmul.f32.gmra.mxu0 %v1284
    %v1303 = vpop.f32.mrf.mxu0
    %v1304 = vadd.f32 0.0, %v1303
    %1305 = vdwg.mxu0
    %v1307 = vrot.slane %v1304, 2
    %v1309 = vadd.f32 %v837, %v1307
    %v1310 = vxor.u32 %v1309, 2147483648
    %v1311 = vmul.f32 %v1310, 1.442695
    %v1312 = vpow.pop %v1311
    %v1313 = vadd.f32 %v1312, 1.0
    %v1314 = vrcp.pop %v1313
    %v1315 = vmul.f32 %v1313, %v1314
    %v1316 = vsub.f32 1.0, %v1315
    %v1317 = vmul.f32 %v1314, %v1316
    %v1318 = vadd.f32 %v1314, %v1317
    %vm1319 = vweird.f32 %v1313
    %vm1320 = vweird.f32 %v1314
    %vm1321 = vmor %vm1319, %vm1320
    %v1322 = vsel %vm1321, %v1314, %v1318
    %v1323 = vand.u32 2147483647, %v1313
    %vm1324 = vcmp.eq.f32.partialorder %v1323, 8.507059e+37
    %v1325 = vand.u32 %v1313, 2147483648
    %v1326 = vor.u32 1.1754944e-38, %v1325
    %v1327 = vsel %vm1324, %v1326, %v1322
    %v1328 = vmul.f32 1.0, %v1327
    %v1329 = vtanh.pop %v1309
    %v1331 = vrot.slane %v1203, 6
    %v1333 = vmul.f32 %v1328, %v1331
    %1335 = vrot.lane.b32.xlu0 %v1329, 64
    %v1336 = vpop.permute.xlu0 %1335
    %v1338 = vmul.f32 %v1328, %v1336
    %1340 = vrot.lane.b32.xlu0 %v1338, 32
    %v1341 = vpop.permute.xlu0 %1340
    %v1343 = vadd.f32 %v1333, %v1341
    %v1344 = vtanh.pop %v1343
    %1346 = vrot.lane.b32.xlu0 %v1344, 64
    %v1347 = vpop.permute.xlu0 %1346
    %v1349 = vmul.f32 %v1328, %v1347
    %1351 = vrot.lane.b32.xlu0 %v1349, 32
    %v1352 = vpop.permute.xlu0 %1351
    %v1355 = vrot.slane %v1280, 2
    %1356 = vrot.lane.b32.xlu0 %v1355, 64
    %v1357 = vpop.permute.xlu0 %1356
    %v1359 = vsel %vm864, %v1352, %v1357
    %v1361 = vrot.slane %v1359, 6
    %v1362 = vsel %vm939, %v1361, 0
    %1364 = vmatpush.msra.mxu0 0.0
    %1365 = vmatpush.msra.mxu0 0.0
    %1366 = vmatpush.msra.mxu0 0.0
    %1367 = vmatpush.msra.mxu0 0.0
    %1368 = vmatpush.msra.mxu0 0.0
    %1369 = vmatpush.msra.mxu0 0.0
    %1370 = vmatpush.msra.mxu0 0.0
    %1371 = vmatpush.msra.mxu0 0.0
    %1372 = vmatpush.msra.mxu0 %v853
    %1373 = vmatpush.msra.mxu0 %v852
    %1374 = vmatpush.msra.mxu0 %v851
    %1375 = vmatpush.msra.mxu0 %v850
    %1376 = vmatpush.msra.mxu0 %v849
    %1377 = vmatpush.msra.mxu0 %v848
    %1378 = vmatpush.msra.mxu0 %v847
    %1379 = vmatpush.msra.mxu0 %v846
    %1380 = vmatmul.f32.gmra.mxu0 %v1362
    %v1381 = vpop.f32.mrf.mxu0
    %v1382 = vadd.f32 %v856, %v1381
    %1383 = vdwg.mxu0
    %v1384 = vxor.u32 %v1382, 2147483648
    %v1385 = vmul.f32 %v1384, 1.442695
    %v1386 = vpow.pop %v1385
    %v1387 = vadd.f32 %v1386, 1.0
    %v1388 = vrcp.pop %v1387
    %v1389 = vmul.f32 %v1387, %v1388
    %v1390 = vsub.f32 1.0, %v1389
    %v1391 = vmul.f32 %v1388, %v1390
    %v1392 = vadd.f32 %v1388, %v1391
    %vm1393 = vweird.f32 %v1387
    %vm1394 = vweird.f32 %v1388
    %vm1395 = vmor %vm1393, %vm1394
    %v1396 = vsel %vm1395, %v1388, %v1392
    %v1397 = vand.u32 2147483647, %v1387
    %vm1398 = vcmp.eq.f32.partialorder %v1397, 8.507059e+37
    %v1399 = vand.u32 %v1387, 2147483648
    %v1400 = vor.u32 1.1754944e-38, %v1399
    %v1401 = vsel %vm1398, %v1400, %v1396
    %v1402 = vmul.f32 1.0, %v1401
    %v1403 = vtanh.pop %v1382
    %v1404 = vmul.f32 %v1402, %v1274
    %1406 = vrot.lane.b32.xlu0 %v1403, 64
    %v1407 = vpop.permute.xlu0 %1406
    %v1409 = vmul.f32 %v1402, %v1407
    %1411 = vrot.lane.b32.xlu0 %v1409, 32
    %v1412 = vpop.permute.xlu0 %1411
    %v1414 = vadd.f32 %v1404, %v1412
    %v1415 = vtanh.pop %v1414
    %1417 = vrot.lane.b32.xlu0 %v1415, 64
    %v1418 = vpop.permute.xlu0 %1417
    %v1420 = vmul.f32 %v1402, %v1418
    %v1421 = vrot.slane %v1349, 6
    %1422 = vrot.lane.b32.xlu0 %v1421, 32
    %v1423 = vpop.permute.xlu0 %1422
    %v1424 = vsel %vm864, %v1423, 0
    %1426 = vmatpush.msra.mxu0 0.0
    %1427 = vmatpush.msra.mxu0 0.0
    %1428 = vmatpush.msra.mxu0 0.0
    %1429 = vmatpush.msra.mxu0 0.0
    %1430 = vmatpush.msra.mxu0 0.0
    %1431 = vmatpush.msra.mxu0 0.0
    %1432 = vmatpush.msra.mxu0 0.0
    %1433 = vmatpush.msra.mxu0 0.0
    %1434 = vmatpush.msra.mxu0 0.0
    %1435 = vmatpush.msra.mxu0 0.0
    %1436 = vmatpush.msra.mxu0 0.0
    %1437 = vmatpush.msra.mxu0 0.0
    %1438 = vmatpush.msra.mxu0 %v845
    %1439 = vmatpush.msra.mxu0 %v844
    %1440 = vmatpush.msra.mxu0 %v843
    %1441 = vmatpush.msra.mxu0 %v842
    %1442 = vmatmul.f32.gmra.mxu0 %v1424
    %v1443 = vpop.f32.mrf.mxu0
    %v1444 = vadd.f32 0.0, %v1443
    %1445 = vdwg.mxu0
    %v1446 = vadd.f32 %v840, %v1444
    %v1447 = vxor.u32 %v1446, 2147483648
    %v1448 = vmul.f32 %v1447, 1.442695
    %v1449 = vpow.pop %v1448
    %v1450 = vadd.f32 %v1449, 1.0
    %v1451 = vrcp.pop %v1450
    %v1452 = vmul.f32 %v1450, %v1451
    %v1453 = vsub.f32 1.0, %v1452
    %v1454 = vmul.f32 %v1451, %v1453
    %v1455 = vadd.f32 %v1451, %v1454
    %vm1456 = vweird.f32 %v1450
    %vm1457 = vweird.f32 %v1451
    %vm1458 = vmor %vm1456, %vm1457
    %v1459 = vsel %vm1458, %v1451, %v1455
    %v1460 = vand.u32 2147483647, %v1450
    %vm1461 = vcmp.eq.f32.partialorder %v1460, 8.507059e+37
    %v1462 = vand.u32 %v1450, 2147483648
    %v1463 = vor.u32 1.1754944e-38, %v1462
    %v1464 = vsel %vm1461, %v1463, %v1459
    %v1465 = vmul.f32 1.0, %v1464
    %v1466 = vtanh.pop %v1446
    %v1468 = vrot.slane %v1343, 6
    %v1470 = vmul.f32 %v1465, %v1468
    %1472 = vrot.lane.b32.xlu0 %v1466, 64
    %v1473 = vpop.permute.xlu0 %1472
    %v1475 = vmul.f32 %v1465, %v1473
    %1477 = vrot.lane.b32.xlu0 %v1475, 32
    %v1478 = vpop.permute.xlu0 %1477
    %v1480 = vadd.f32 %v1470, %v1478
    %v1481 = vtanh.pop %v1480
    %1483 = vrot.lane.b32.xlu0 %v1481, 64
    %v1484 = vpop.permute.xlu0 %1483
    %v1486 = vmul.f32 %v1465, %v1484
    %1488 = vrot.lane.b32.xlu0 %v1486, 32
    %v1489 = vpop.permute.xlu0 %1488
    %1492 = vrot.lane.b32.xlu0 %v1420, 64
    %v1493 = vpop.permute.xlu0 %1492
    %v1495 = vsel %vm864, %v1489, %v1493
    %v1497 = vsel %vm939, %v1495, 0
    %1499 = vmatpush.msra.mxu0 0.0
    %1500 = vmatpush.msra.mxu0 0.0
    %1501 = vmatpush.msra.mxu0 0.0
    %1502 = vmatpush.msra.mxu0 0.0
    %1503 = vmatpush.msra.mxu0 0.0
    %1504 = vmatpush.msra.mxu0 0.0
    %1505 = vmatpush.msra.mxu0 0.0
    %1506 = vmatpush.msra.mxu0 0.0
    %1507 = vmatpush.msra.mxu0 %v853
    %1508 = vmatpush.msra.mxu0 %v852
    %1509 = vmatpush.msra.mxu0 %v851
    %1510 = vmatpush.msra.mxu0 %v850
    %1511 = vmatpush.msra.mxu0 %v849
    %1512 = vmatpush.msra.mxu0 %v848
    %1513 = vmatpush.msra.mxu0 %v847
    %1514 = vmatpush.msra.mxu0 %v846
    %1515 = vmatmul.f32.gmra.mxu0 %v1497
    %v1516 = vpop.f32.mrf.mxu0
    %v1517 = vadd.f32 %v856, %v1516
    %1518 = vdwg.mxu0
    %v1519 = vxor.u32 %v1517, 2147483648
    %v1520 = vmul.f32 %v1519, 1.442695
    %v1521 = vpow.pop %v1520
    %v1522 = vadd.f32 %v1521, 1.0
    %v1523 = vrcp.pop %v1522
    %v1524 = vmul.f32 %v1522, %v1523
    %v1525 = vsub.f32 1.0, %v1524
    %v1526 = vmul.f32 %v1523, %v1525
    %v1527 = vadd.f32 %v1523, %v1526
    %vm1528 = vweird.f32 %v1522
    %vm1529 = vweird.f32 %v1523
    %vm1530 = vmor %vm1528, %vm1529
    %v1531 = vsel %vm1530, %v1523, %v1527
    %v1532 = vand.u32 2147483647, %v1522
    %vm1533 = vcmp.eq.f32.partialorder %v1532, 8.507059e+37
    %v1534 = vand.u32 %v1522, 2147483648
    %v1535 = vor.u32 1.1754944e-38, %v1534
    %v1536 = vsel %vm1533, %v1535, %v1531
    %v1537 = vmul.f32 1.0, %v1536
    %v1538 = vtanh.pop %v1517
    %v1539 = vmul.f32 %v1537, %v1414
    %1541 = vrot.lane.b32.xlu0 %v1538, 64
    %v1542 = vpop.permute.xlu0 %1541
    %v1544 = vmul.f32 %v1537, %v1542
    %1546 = vrot.lane.b32.xlu0 %v1544, 32
    %v1547 = vpop.permute.xlu0 %1546
    %v1549 = vadd.f32 %v1539, %v1547
    %v1550 = vtanh.pop %v1549
    %1552 = vrot.lane.b32.xlu0 %v1550, 64
    %v1553 = vpop.permute.xlu0 %1552
    %v1555 = vmul.f32 %v1537, %v1553
    %v1556 = vsel %vm864, %v1489, 0
    %1558 = vmatpush.msra.mxu0 0.0
    %1559 = vmatpush.msra.mxu0 0.0
    %1560 = vmatpush.msra.mxu0 0.0
    %1561 = vmatpush.msra.mxu0 0.0
    %1562 = vmatpush.msra.mxu0 0.0
    %1563 = vmatpush.msra.mxu0 0.0
    %1564 = vmatpush.msra.mxu0 0.0
    %1565 = vmatpush.msra.mxu0 0.0
    %1566 = vmatpush.msra.mxu0 0.0
    %1567 = vmatpush.msra.mxu0 0.0
    %1568 = vmatpush.msra.mxu0 0.0
    %1569 = vmatpush.msra.mxu0 0.0
    %1570 = vmatpush.msra.mxu0 %v845
    %1571 = vmatpush.msra.mxu0 %v844
    %1572 = vmatpush.msra.mxu0 %v843
    %1573 = vmatpush.msra.mxu0 %v842
    %1574 = vmatmul.f32.gmra.mxu0 %v1556
    %v1575 = vpop.f32.mrf.mxu0
    %v1576 = vadd.f32 0.0, %v1575
    %1577 = vdwg.mxu0
    %v1579 = vrot.slane %v1576, 6
    %v1581 = vadd.f32 %v840, %v1579
    %v1582 = vxor.u32 %v1581, 2147483648
    %v1583 = vmul.f32 %v1582, 1.442695
    %v1584 = vpow.pop %v1583
    %v1585 = vadd.f32 %v1584, 1.0
    %v1586 = vrcp.pop %v1585
    %v1587 = vmul.f32 %v1585, %v1586
    %v1588 = vsub.f32 1.0, %v1587
    %v1589 = vmul.f32 %v1586, %v1588
    %v1590 = vadd.f32 %v1586, %v1589
    %vm1591 = vweird.f32 %v1585
    %vm1592 = vweird.f32 %v1586
    %vm1593 = vmor %vm1591, %vm1592
    %v1594 = vsel %vm1593, %v1586, %v1590
    %v1595 = vand.u32 2147483647, %v1585
    %vm1596 = vcmp.eq.f32.partialorder %v1595, 8.507059e+37
    %v1597 = vand.u32 %v1585, 2147483648
    %v1598 = vor.u32 1.1754944e-38, %v1597
    %v1599 = vsel %vm1596, %v1598, %v1594
    %v1600 = vmul.f32 1.0, %v1599
    %v1601 = vtanh.pop %v1581
    %v1603 = vrot.slane %v1480, 6
    %v1605 = vmul.f32 %v1600, %v1603
    %1607 = vrot.lane.b32.xlu0 %v1601, 64
    %v1608 = vpop.permute.xlu0 %1607
    %v1610 = vmul.f32 %v1600, %v1608
    %1612 = vrot.lane.b32.xlu0 %v1610, 32
    %v1613 = vpop.permute.xlu0 %1612
    %v1615 = vadd.f32 %v1605, %v1613
    %v1616 = vtanh.pop %v1615
    %1618 = vrot.lane.b32.xlu0 %v1616, 64
    %v1619 = vpop.permute.xlu0 %1618
    %v1621 = vmul.f32 %v1600, %v1619
    %1623 = vrot.lane.b32.xlu0 %v1621, 32
    %v1624 = vpop.permute.xlu0 %1623
    %v1627 = vrot.slane %v1555, 6
    %1628 = vrot.lane.b32.xlu0 %v1627, 64
    %v1629 = vpop.permute.xlu0 %1628
    %v1631 = vsel %vm864, %v1624, %v1629
    %v1633 = vrot.slane %v1631, 2
    %v1634 = vsel %vm939, %v1633, 0
    %1636 = vmatpush.msra.mxu0 0.0
    %1637 = vmatpush.msra.mxu0 0.0
    %1638 = vmatpush.msra.mxu0 0.0
    %1639 = vmatpush.msra.mxu0 0.0
    %1640 = vmatpush.msra.mxu0 0.0
    %1641 = vmatpush.msra.mxu0 0.0
    %1642 = vmatpush.msra.mxu0 0.0
    %1643 = vmatpush.msra.mxu0 0.0
    %1644 = vmatpush.msra.mxu0 %v853
    %1645 = vmatpush.msra.mxu0 %v852
    %1646 = vmatpush.msra.mxu0 %v851
    %1647 = vmatpush.msra.mxu0 %v850
    %1648 = vmatpush.msra.mxu0 %v849
    %1649 = vmatpush.msra.mxu0 %v848
    %1650 = vmatpush.msra.mxu0 %v847
    %1651 = vmatpush.msra.mxu0 %v846
    %1652 = vmatmul.f32.gmra.mxu0 %v1634
    %v1653 = vpop.f32.mrf.mxu0
    %v1654 = vadd.f32 %v856, %v1653
    %1655 = vdwg.mxu0
    %v1656 = vxor.u32 %v1654, 2147483648
    %v1657 = vmul.f32 %v1656, 1.442695
    %v1658 = vpow.pop %v1657
    %v1659 = vadd.f32 %v1658, 1.0
    %v1660 = vrcp.pop %v1659
    %v1661 = vmul.f32 %v1659, %v1660
    %v1662 = vsub.f32 1.0, %v1661
    %v1663 = vmul.f32 %v1660, %v1662
    %v1664 = vadd.f32 %v1660, %v1663
    %vm1665 = vweird.f32 %v1659
    %vm1666 = vweird.f32 %v1660
    %vm1667 = vmor %vm1665, %vm1666
    %v1668 = vsel %vm1667, %v1660, %v1664
    %v1669 = vand.u32 2147483647, %v1659
    %vm1670 = vcmp.eq.f32.partialorder %v1669, 8.507059e+37
    %v1671 = vand.u32 %v1659, 2147483648
    %v1672 = vor.u32 1.1754944e-38, %v1671
    %v1673 = vsel %vm1670, %v1672, %v1668
    %v1674 = vmul.f32 1.0, %v1673
    %v1675 = vtanh.pop %v1654
    %v1676 = vmul.f32 %v1674, %v1549
    %1678 = vrot.lane.b32.xlu0 %v1675, 64
    %v1679 = vpop.permute.xlu0 %1678
    %v1681 = vmul.f32 %v1674, %v1679
    %1683 = vrot.lane.b32.xlu0 %v1681, 32
    %v1684 = vpop.permute.xlu0 %1683
    %v1686 = vadd.f32 %v1676, %v1684
    %v1687 = vtanh.pop %v1686
    %1689 = vrot.lane.b32.xlu0 %v1687, 64
    %v1690 = vpop.permute.xlu0 %1689
    %v1692 = vmul.f32 %v1674, %v1690
    %v1693 = vrot.slane %v1621, 2
    %1694 = vrot.lane.b32.xlu0 %v1693, 32
    %v1695 = vpop.permute.xlu0 %1694
    %v1696 = vsel %vm864, %v1695, 0
    %1698 = vmatpush.msra.mxu0 0.0
    %1699 = vmatpush.msra.mxu0 0.0
    %1700 = vmatpush.msra.mxu0 0.0
    %1701 = vmatpush.msra.mxu0 0.0
    %1702 = vmatpush.msra.mxu0 0.0
    %1703 = vmatpush.msra.mxu0 0.0
    %1704 = vmatpush.msra.mxu0 0.0
    %1705 = vmatpush.msra.mxu0 0.0
    %1706 = vmatpush.msra.mxu0 0.0
    %1707 = vmatpush.msra.mxu0 0.0
    %1708 = vmatpush.msra.mxu0 0.0
    %1709 = vmatpush.msra.mxu0 0.0
    %1710 = vmatpush.msra.mxu0 %v845
    %1711 = vmatpush.msra.mxu0 %v844
    %1712 = vmatpush.msra.mxu0 %v843
    %1713 = vmatpush.msra.mxu0 %v842
    %1714 = vmatmul.f32.gmra.mxu0 %v1696
    %v1715 = vpop.f32.mrf.mxu0
    %v1716 = vadd.f32 0.0, %v1715
    %1717 = vdwg.mxu0
    %v1719 = vrot.slane %v1716, 4
    %v1721 = vadd.f32 %v840, %v1719
    %v1722 = vxor.u32 %v1721, 2147483648
    %v1723 = vmul.f32 %v1722, 1.442695
    %v1724 = vpow.pop %v1723
    %v1725 = vadd.f32 %v1724, 1.0
    %v1726 = vrcp.pop %v1725
    %v1727 = vmul.f32 %v1725, %v1726
    %v1728 = vsub.f32 1.0, %v1727
    %v1729 = vmul.f32 %v1726, %v1728
    %v1730 = vadd.f32 %v1726, %v1729
    %vm1731 = vweird.f32 %v1725
    %vm1732 = vweird.f32 %v1726
    %vm1733 = vmor %vm1731, %vm1732
    %v1734 = vsel %vm1733, %v1726, %v1730
    %v1735 = vand.u32 2147483647, %v1725
    %vm1736 = vcmp.eq.f32.partialorder %v1735, 8.507059e+37
    %v1737 = vand.u32 %v1725, 2147483648
    %v1738 = vor.u32 1.1754944e-38, %v1737
    %v1739 = vsel %vm1736, %v1738, %v1734
    %v1740 = vmul.f32 1.0, %v1739
    %v1741 = vtanh.pop %v1721
    %v1743 = vrot.slane %v1615, 6
    %v1745 = vmul.f32 %v1740, %v1743
    %1747 = vrot.lane.b32.xlu0 %v1741, 64
    %v1748 = vpop.permute.xlu0 %1747
    %v1750 = vmul.f32 %v1740, %v1748
    %1752 = vrot.lane.b32.xlu0 %v1750, 32
    %v1753 = vpop.permute.xlu0 %1752
    %v1755 = vadd.f32 %v1745, %v1753
    %v1756 = vtanh.pop %v1755
    %1758 = vrot.lane.b32.xlu0 %v1756, 64
    %v1759 = vpop.permute.xlu0 %1758
    %v1761 = vmul.f32 %v1740, %v1759
    %1763 = vrot.lane.b32.xlu0 %v1761, 32
    %v1764 = vpop.permute.xlu0 %1763
    %v1767 = vrot.slane %v1692, 4
    %1768 = vrot.lane.b32.xlu0 %v1767, 64
    %v1769 = vpop.permute.xlu0 %1768
    %v1771 = vsel %vm864, %v1764, %v1769
    %v1773 = vrot.slane %v1771, 4
    %v1774 = vsel %vm939, %v1773, 0
    %1776 = vmatpush.msra.mxu0 0.0
    %1777 = vmatpush.msra.mxu0 0.0
    %1778 = vmatpush.msra.mxu0 0.0
    %1779 = vmatpush.msra.mxu0 0.0
    %1780 = vmatpush.msra.mxu0 0.0
    %1781 = vmatpush.msra.mxu0 0.0
    %1782 = vmatpush.msra.mxu0 0.0
    %1783 = vmatpush.msra.mxu0 0.0
    %1784 = vmatpush.msra.mxu0 %v853
    %1785 = vmatpush.msra.mxu0 %v852
    %1786 = vmatpush.msra.mxu0 %v851
    %1787 = vmatpush.msra.mxu0 %v850
    %1788 = vmatpush.msra.mxu0 %v849
    %1789 = vmatpush.msra.mxu0 %v848
    %1790 = vmatpush.msra.mxu0 %v847
    %1791 = vmatpush.msra.mxu0 %v846
    %1792 = vmatmul.f32.gmra.mxu0 %v1774
    %v1793 = vpop.f32.mrf.mxu0
    %v1794 = vadd.f32 %v856, %v1793
    %1795 = vdwg.mxu0
    %v1796 = vxor.u32 %v1794, 2147483648
    %v1797 = vmul.f32 %v1796, 1.442695
    %v1798 = vpow.pop %v1797
    %v1799 = vadd.f32 %v1798, 1.0
    %v1800 = vrcp.pop %v1799
    %v1801 = vmul.f32 %v1799, %v1800
    %v1802 = vsub.f32 1.0, %v1801
    %v1803 = vmul.f32 %v1800, %v1802
    %v1804 = vadd.f32 %v1800, %v1803
    %vm1805 = vweird.f32 %v1799
    %vm1806 = vweird.f32 %v1800
    %vm1807 = vmor %vm1805, %vm1806
    %v1808 = vsel %vm1807, %v1800, %v1804
    %v1809 = vand.u32 2147483647, %v1799
    %vm1810 = vcmp.eq.f32.partialorder %v1809, 8.507059e+37
    %v1811 = vand.u32 %v1799, 2147483648
    %v1812 = vor.u32 1.1754944e-38, %v1811
    %v1813 = vsel %vm1810, %v1812, %v1808
    %v1814 = vmul.f32 1.0, %v1813
    %v1815 = vtanh.pop %v1794
    %v1816 = vmul.f32 %v1814, %v1686
    %1818 = vrot.lane.b32.xlu0 %v1815, 64
    %v1819 = vpop.permute.xlu0 %1818
    %v1821 = vmul.f32 %v1814, %v1819
    %1823 = vrot.lane.b32.xlu0 %v1821, 32
    %v1824 = vpop.permute.xlu0 %1823
    %v1826 = vadd.f32 %v1816, %v1824
    %v1827 = vtanh.pop %v1826
    %1829 = vrot.lane.b32.xlu0 %v1827, 64
    %v1830 = vpop.permute.xlu0 %1829
    %v1832 = vmul.f32 %v1814, %v1830
    %v1833 = vrot.slane %v1761, 4
    %1834 = vrot.lane.b32.xlu0 %v1833, 32
    %v1835 = vpop.permute.xlu0 %1834
    %v1836 = vsel %vm864, %v1835, 0
    %1838 = vmatpush.msra.mxu0 0.0
    %1839 = vmatpush.msra.mxu0 0.0
    %1840 = vmatpush.msra.mxu0 0.0
    %1841 = vmatpush.msra.mxu0 0.0
    %1842 = vmatpush.msra.mxu0 0.0
    %1843 = vmatpush.msra.mxu0 0.0
    %1844 = vmatpush.msra.mxu0 0.0
    %1845 = vmatpush.msra.mxu0 0.0
    %1846 = vmatpush.msra.mxu0 0.0
    %1847 = vmatpush.msra.mxu0 0.0
    %1848 = vmatpush.msra.mxu0 0.0
    %1849 = vmatpush.msra.mxu0 0.0
    %1850 = vmatpush.msra.mxu0 %v845
    %1851 = vmatpush.msra.mxu0 %v844
    %1852 = vmatpush.msra.mxu0 %v843
    %1853 = vmatpush.msra.mxu0 %v842
    %1854 = vmatmul.f32.gmra.mxu0 %v1836
    %v1855 = vpop.f32.mrf.mxu0
    %v1856 = vadd.f32 0.0, %v1855
    %1857 = vdwg.mxu0
    %v1859 = vrot.slane %v1856, 2
    %v1861 = vadd.f32 %v840, %v1859
    %v1862 = vxor.u32 %v1861, 2147483648
    %v1863 = vmul.f32 %v1862, 1.442695
    %v1864 = vpow.pop %v1863
    %v1865 = vadd.f32 %v1864, 1.0
    %v1866 = vrcp.pop %v1865
    %v1867 = vmul.f32 %v1865, %v1866
    %v1868 = vsub.f32 1.0, %v1867
    %v1869 = vmul.f32 %v1866, %v1868
    %v1870 = vadd.f32 %v1866, %v1869
    %vm1871 = vweird.f32 %v1865
    %vm1872 = vweird.f32 %v1866
    %vm1873 = vmor %vm1871, %vm1872
    %v1874 = vsel %vm1873, %v1866, %v1870
    %v1875 = vand.u32 2147483647, %v1865
    %vm1876 = vcmp.eq.f32.partialorder %v1875, 8.507059e+37
    %v1877 = vand.u32 %v1865, 2147483648
    %v1878 = vor.u32 1.1754944e-38, %v1877
    %v1879 = vsel %vm1876, %v1878, %v1874
    %v1880 = vmul.f32 1.0, %v1879
    %v1881 = vtanh.pop %v1861
    %v1883 = vrot.slane %v1755, 6
    %v1885 = vmul.f32 %v1880, %v1883
    %1887 = vrot.lane.b32.xlu0 %v1881, 64
    %v1888 = vpop.permute.xlu0 %1887
    %v1890 = vmul.f32 %v1880, %v1888
    %1892 = vrot.lane.b32.xlu0 %v1890, 32
    %v1893 = vpop.permute.xlu0 %1892
    %v1895 = vadd.f32 %v1885, %v1893
    %v1896 = vtanh.pop %v1895
    %1898 = vrot.lane.b32.xlu0 %v1896, 64
    %v1899 = vpop.permute.xlu0 %1898
    %v1901 = vmul.f32 %v1880, %v1899
    %1903 = vrot.lane.b32.xlu0 %v1901, 32
    %v1904 = vpop.permute.xlu0 %1903
    %v1907 = vrot.slane %v1832, 2
    %1908 = vrot.lane.b32.xlu0 %v1907, 64
    %v1909 = vpop.permute.xlu0 %1908
    %v1911 = vsel %vm864, %v1904, %v1909
    %v1913 = vrot.slane %v1911, 6
    %v1914 = vsel %vm939, %v1913, 0
    %1916 = vmatpush.msra.mxu0 0.0
    %1917 = vmatpush.msra.mxu0 0.0
    %1918 = vmatpush.msra.mxu0 0.0
    %1919 = vmatpush.msra.mxu0 0.0
    %1920 = vmatpush.msra.mxu0 0.0
    %1921 = vmatpush.msra.mxu0 0.0
    %1922 = vmatpush.msra.mxu0 0.0
    %1923 = vmatpush.msra.mxu0 0.0
    %1924 = vmatpush.msra.mxu0 %v853
    %1925 = vmatpush.msra.mxu0 %v852
    %1926 = vmatpush.msra.mxu0 %v851
    %1927 = vmatpush.msra.mxu0 %v850
    %1928 = vmatpush.msra.mxu0 %v849
    %1929 = vmatpush.msra.mxu0 %v848
    %1930 = vmatpush.msra.mxu0 %v847
    %1931 = vmatpush.msra.mxu0 %v846
    %1932 = vmatmul.f32.gmra.mxu0 %v1914
    %v1933 = vpop.f32.mrf.mxu0
    %v1934 = vadd.f32 %v856, %v1933
    %1935 = vdwg.mxu0
    %v1936 = vxor.u32 %v1934, 2147483648
    %v1937 = vmul.f32 %v1936, 1.442695
    %v1938 = vpow.pop %v1937
    %v1939 = vadd.f32 %v1938, 1.0
    %v1940 = vrcp.pop %v1939
    %v1941 = vmul.f32 %v1939, %v1940
    %v1942 = vsub.f32 1.0, %v1941
    %v1943 = vmul.f32 %v1940, %v1942
    %v1944 = vadd.f32 %v1940, %v1943
    %vm1945 = vweird.f32 %v1939
    %vm1946 = vweird.f32 %v1940
    %vm1947 = vmor %vm1945, %vm1946
    %v1948 = vsel %vm1947, %v1940, %v1944
    %v1949 = vand.u32 2147483647, %v1939
    %vm1950 = vcmp.eq.f32.partialorder %v1949, 8.507059e+37
    %v1951 = vand.u32 %v1939, 2147483648
    %v1952 = vor.u32 1.1754944e-38, %v1951
    %v1953 = vsel %vm1950, %v1952, %v1948
    %v1954 = vmul.f32 1.0, %v1953
    %v1955 = vtanh.pop %v1934
    %v1956 = vmul.f32 %v1954, %v1826
    %1958 = vrot.lane.b32.xlu0 %v1955, 64
    %v1959 = vpop.permute.xlu0 %1958
    %v1961 = vmul.f32 %v1954, %v1959
    %1963 = vrot.lane.b32.xlu0 %v1961, 32
    %v1964 = vpop.permute.xlu0 %1963
    %v1966 = vadd.f32 %v1956, %v1964
    %v1967 = vtanh.pop %v1966
    %1969 = vrot.lane.b32.xlu0 %v1967, 64
    %v1970 = vpop.permute.xlu0 %1969
    %v1972 = vmul.f32 %v1954, %v1970
    %v1973 = vrot.slane %v1140, 7
    %v1975 = vrot.slane %v1280, 6
    %v1977 = vrot.slane %v1420, 5
    %v1979 = vrot.slane %v1555, 4
    %v1981 = vrot.slane %v1692, 3
    %v1985 = vrot.slane %v1972, 1
    %vm1987 = vcmask 1040384
    %v1988 = vsel %vm1987, %v1003, %v1973
    %vm1989 = vcmask 1041408
    %v1990 = vsel %vm1989, %v1988, %v1975
    %vm1991 = vcmask 1042432
    %v1992 = vsel %vm1991, %v1990, %v1977
    %v1993 = vsel %vm246, %v1992, %v1979
    %vm1994 = vcmask 1044480
    %v1995 = vsel %vm1994, %v1993, %v1981
    %vm1996 = vcmask 1045504
    %v1997 = vsel %vm1996, %v1995, %v1907
    %vm1998 = vcmask 1046528
    %v1999 = vsel %vm1998, %v1997, %v1985
    %v2000 = vrot.slane %v1003, 1
    %v2002 = vrot.slane %v1280, 7
    %v2004 = vrot.slane %v1420, 6
    %v2006 = vrot.slane %v1555, 5
    %v2009 = vrot.slane %v1832, 3
    %v2011 = vrot.slane %v1972, 2
    %v2013 = vsel %vm1987, %v2000, %v1140
    %v2014 = vsel %vm1989, %v2013, %v2002
    %v2015 = vsel %vm1991, %v2014, %v2004
    %v2016 = vsel %vm246, %v2015, %v2006
    %v2017 = vsel %vm1994, %v2016, %v1767
    %v2018 = vsel %vm1996, %v2017, %v2009
    %v2019 = vsel %vm1998, %v2018, %v2011
    %v2020 = vld [vmem:[%s12] sm:$0xff]
    %v2021 = vld [vmem:[%s12 + $0x8] sm:$0xff]
    %v2022 = vld [vmem:[%s12 + $0x10] sm:$0xff]
    %v2023 = vld [vmem:[%s12 + $0x18] sm:$0xff]
    %v2024 = vld [vmem:[%s13] sm:$0x1]
    %v2026 = vperm.slane %v2024, 0
    %2030 = vrot.lane.b32.xlu0 %v1999, 32
    %v2031 = vpop.permute.xlu0 %2030
    %2032 = vrot.lane.b32.xlu0 %v2019, 32
    %v2033 = vpop.permute.xlu0 %2032
    %v2034 = vsel %vm864, %v2031, 0
    %v2036 = vsel %vm864, %v2033, 0
    %2038 = vmatpush.msra.mxu0 0.0
    %2039 = vmatpush.msra.mxu0 0.0
    %2040 = vmatpush.msra.mxu0 0.0
    %2041 = vmatpush.msra.mxu0 0.0
    %2042 = vmatpush.msra.mxu0 0.0
    %2043 = vmatpush.msra.mxu0 0.0
    %2044 = vmatpush.msra.mxu0 0.0
    %2045 = vmatpush.msra.mxu0 0.0
    %2046 = vmatpush.msra.mxu0 0.0
    %2047 = vmatpush.msra.mxu0 0.0
    %2048 = vmatpush.msra.mxu0 0.0
    %2049 = vmatpush.msra.mxu0 0.0
    %2050 = vmatpush.msra.mxu0 %v2023
    %2051 = vmatpush.msra.mxu0 %v2022
    %2052 = vmatpush.msra.mxu0 %v2021
    %2053 = vmatpush.msra.mxu0 %v2020
    %2054 = vmatmul.f32.gmra.mxu0 %v2034
    %v2055 = vpop.f32.mrf.mxu0
    %v2056 = vadd.f32 %v2026, %v2055
    %2057 = vmatmul.f32.gmra.mxu0 %v2036
    %v2058 = vpop.f32.mrf.mxu0
    %v2059 = vadd.f32 %v2026, %v2058
    %2060 = vdwg.mxu0
    %vm2061 = vcmask 244736
    %2062 = vst.msk [vmem:[#allocation2] sm:$0xff] %vm2061, %v2056
    %2063 = vst.msk [vmem:[#allocation2 + $0x8] sm:$0xff] %vm2061, %v2059
    %vm2064 = vcmask 261126
    %2065 = vst.msk [vmem:[#allocation4 - $0x6] sm:$0xc0] %vm2064, %v1904
    %2066 = vrot.lane.b32.xlu0 %v1972, 32
    %v2067 = vpop.permute.xlu0 %2066
    %s2069 = scalar_lea.vmem [#allocation4], 2
    %vm2070 = vcmask 254976
    %2071 = vst.msk [vmem:[%s2069] sm:$0x3] %vm2070, %v2067
    %2073 = vrot.lane.b32.xlu0 %v1895, 96
    %v2074 = vpop.permute.xlu0 %2073
    %2076 = vst.msk [vmem:[#allocation6 - $0x6] sm:$0xc0] %vm2064, %v2074
    %2078 = vrot.lane.b32.xlu0 %v1966, 96
    %v2079 = vpop.permute.xlu0 %2078
    %s2081 = scalar_lea.vmem [#allocation6], 2
    %2082 = vst.msk [vmem:[%s2081] sm:$0x3] %vm2070, %v2079
    // Predicated region
    $region66: #{char_aware_lm_forward.1} parent=1 // pred_check
      _
    $region67: #{char_aware_lm_forward.1} parent=1 // pred_check_branch
      %2084 = sbr.rel (0) target = $region69
    $region68: #{char_aware_lm_forward.1} parent=1 // pred_region
      %2086 = vsyncadd [#allocation3], 0
      %s2087 = sshll.u32 [#allocation2], 4
      %s2088 = int_to_ptr.vmem [resolvable:$true] %s2087
      %s2089 = sshll.u32 %s16, 4
      %s2090 = int_to_ptr.hbm [resolvable:$true] %s2089
      %2095 = dma.vmem_to_hbm [thread:$0]  %s2088, 256, %s2090, [#allocation3], 128, 128, 8
    $region69: #{char_aware_lm_forward.1} parent=1 // pred_fallthru
      _
    // Predicated region
    $region70: #{char_aware_lm_forward.1} parent=1 // pred_check
      _
    $region71: #{char_aware_lm_forward.1} parent=1 // pred_check_branch
      %2097 = sbr.rel (0) target = $region73
    $region72: #{char_aware_lm_forward.1} parent=1 // pred_region
      %2099 = vsyncadd [#allocation5], 0
      %s2100 = sshll.u32 [#allocation4], 4
      %s2101 = int_to_ptr.vmem [resolvable:$true] %s2100
      %s2102 = sshll.u32 %s17, 4
      %s2103 = int_to_ptr.hbm [resolvable:$true] %s2102
      %2108 = dma.vmem_to_hbm [thread:$0]  %s2101, 64, %s2103, [#allocation5], 32, 32, 2
    $region73: #{char_aware_lm_forward.1} parent=1 // pred_fallthru
      _
    // Predicated region
    $region74: #{char_aware_lm_forward.1} parent=1 // pred_check
      _
    $region75: #{char_aware_lm_forward.1} parent=1 // pred_check_branch
      %2110 = sbr.rel (0) target = $region77
    $region76: #{char_aware_lm_forward.1} parent=1 // pred_region
      %2112 = vsyncadd [#allocation5], 0
      %s2113 = sshll.u32 [#allocation6], 4
      %s2114 = int_to_ptr.vmem [resolvable:$true] %s2113
      %s2115 = sshll.u32 %s18, 4
      %s2116 = int_to_ptr.hbm [resolvable:$true] %s2115
      %2121 = dma.vmem_to_hbm [thread:$0]  %s2114, 64, %s2116, [#allocation5], 32, 32, 2
    $region77: #{char_aware_lm_forward.1} parent=1 // pred_fallthru
      _
    // Predicated region
    $region78: #{char_aware_lm_forward.1} parent=1 // pred_check
      _
    $region79: #{char_aware_lm_forward.1} parent=1 // pred_check_branch
      %2123 = sbr.rel (0) target = $region81
    $region80: #{char_aware_lm_forward.1} parent=1 // pred_region
      %2125 = dma.done [#allocation3], 256
    $region81: #{char_aware_lm_forward.1} parent=1 // pred_fallthru
      _
    // Predicated region
    $region82: #{char_aware_lm_forward.1} parent=1 // pred_check
      _
    $region83: #{char_aware_lm_forward.1} parent=1 // pred_check_branch
      %2127 = sbr.rel (0) target = $region85
    $region84: #{char_aware_lm_forward.1} parent=1 // pred_region
      %2129 = dma.done [#allocation5], 64
    $region85: #{char_aware_lm_forward.1} parent=1 // pred_fallthru
      _
    // Predicated region
    $region86: #{char_aware_lm_forward.1} parent=1 // pred_check
      _
    $region87: #{char_aware_lm_forward.1} parent=1 // pred_check_branch
      %2131 = sbr.rel (0) target = $region89
    $region88: #{char_aware_lm_forward.1} parent=1 // pred_region
      %2133 = dma.done [#allocation5], 64
    $region89: #{char_aware_lm_forward.1} parent=1 // pred_fallthru
      _
    %2134 = vsyncpa [#allocation3], 1
    %2135 = vsyncpa [#allocation5], 1

</llo_original>
